<compile_context>
chip_gen: v7x
topology: tpu7x:2x2x1
jax: 0.10.0
libtpu: 0.0.40
codegen_flags: <defaults>
</compile_context>

<pallas_src>
import jax
import jax.numpy as jnp
from jax.experimental import pallas as pl
from jax.experimental.pallas import tpu as pltpu

# ---- problem sizes (small, consistent with the module's forward) ----
B = 8            # per-view batch size (args.batch_size)
C = 4            # input channels
H = W = 16       # spatial
HW = H * W
IN_K = C * HW    # 1024, backbone-matmul contraction dim (pool fused in)
FEAT = 32        # logical backbone feature dim (stands in for 2048)
D1 = 64          # projector hidden 1
D2 = 64          # projector hidden 2
D3 = 32          # projector output dim (BN'd, correlated)
LANE = 128       # padded lane width for all feature dims
LAMBD = 0.0051   # args.lambd
BN_EPS = 1e-5

assert D1 == D2  # packed BN-parameter array assumes equal hidden widths

_vmem = pl.BlockSpec(memory_space=pltpu.MemorySpace.VMEM)
_smem = pl.BlockSpec(memory_space=pltpu.MemorySpace.SMEM)


# -------------------- fused forward + loss kernel --------------------
def _fused_kernel(y1_ref, y2_ref, wb_ref, w1_ref, w2_ref, w3_ref, bnp_ref, o_ref):
    # ---- stack views in VMEM (no HBM concat) ----
    y = jnp.concatenate([y1_ref[...], y2_ref[...]], axis=0)      # [2B, C*H*W] f32

    # ---- backbone: avg-pool fused into the matmul weight (K = C*H*W) ----
    feats = jnp.dot(y.astype(jnp.bfloat16), wb_ref[...],
                    preferred_element_type=jnp.float32)          # [2B, LANE]

    bnp = bnp_ref[...]                                           # [4, LANE] f32
    g1, b1 = bnp[0:1, :], bnp[1:2, :]
    g2, b2 = bnp[2:3, :], bnp[3:4, :]

    def bn_per_view(h, g=None, b=None):
        # BatchNorm1d in training mode (biased batch variance, eps=1e-5),
        # statistics computed PER VIEW: rows [:B] = view 1, rows [B:] = view 2.
        # One-pass stats: var = E[x^2] - mu^2; `centered` bound once.
        d = h.shape[-1]
        hv = h.reshape(2, B, d)
        mu = jnp.mean(hv, axis=1, keepdims=True)
        ex2 = jnp.mean(hv * hv, axis=1, keepdims=True)
        var = ex2 - mu * mu
        centered = hv - mu
        hn = (centered * jax.lax.rsqrt(var + BN_EPS)).reshape(2 * B, d)
        if g is not None:
            hn = hn * g + b
        return hn

    # ---- projector (both views in one matmul per layer, bf16 MXU / f32 acc) ----
    h = jnp.dot(feats.astype(jnp.bfloat16), w1_ref[...],
                preferred_element_type=jnp.float32)              # [2B, LANE]
    h = jnp.maximum(bn_per_view(h, g1, b1), 0.0)
    h = jnp.dot(h.astype(jnp.bfloat16), w2_ref[...],
                preferred_element_type=jnp.float32)              # [2B, LANE]
    h = jnp.maximum(bn_per_view(h, g2, b2), 0.0)
    z = jnp.dot(h.astype(jnp.bfloat16), w3_ref[...],
                preferred_element_type=jnp.float32)              # [2B, LANE]

    # ---- loss: affine-free BN per view, cross-correlation, Barlow-Twins loss ----
    zn = bn_per_view(z)                                          # [2B, LANE]
    z1n = zn[:B]
    z2n = zn[B:]

    # c = bn(z1).T @ bn(z2) / batch_size; batch axis contracted directly.
    # Kept in f32: operands are already-normalized small tiles.
    c = jax.lax.dot_general(
        z1n, z2n,
        dimension_numbers=(((0,), (0,)), ((), ())),
        preferred_element_type=jnp.float32,
    ) * (1.0 / float(B))                                         # [LANE, LANE]

    # TODO(synk): torch.distributed.all_reduce(c) — identity on a single device;
    # a multi-device version would ring-reduce c with pltpu.make_async_remote_copy.

    row = jax.lax.broadcasted_iota(jnp.int32, (LANE, LANE), 0)
    col = jax.lax.broadcasted_iota(jnp.int32, (LANE, LANE), 1)
    # Padded cols/rows of c are exactly 0 (zero-padded features normalize to 0),
    # so they contribute nothing to sum(c^2); the diagonal must be masked to the
    # first D3 entries or each padded diag element would add (0-1)^2 = 1.
    diag = (row == col) & (row < D3)

    # loss = on_diag + LAMBD * off_diag, folded into one masked reduction:
    #   LAMBD * sum(c^2) + sum_diag((c-1)^2 - LAMBD * c^2)
    total_sq = jnp.sum(c * c)
    diag_term = jnp.sum(jnp.where(diag, (c - 1.0) * (c - 1.0) - LAMBD * c * c, 0.0))
    o_ref[0, 0] = LAMBD * total_sq + diag_term


# -------------------- wrapper --------------------
def barlow_twins_forward(y1, y2, wb_exp, w1p, w2p, w3p, bn_params):
    # Free metadata reshapes only — no extra HBM ops in front of the kernel.
    y1f = y1.reshape(B, IN_K)
    y2f = y2.reshape(B, IN_K)
    out = pl.pallas_call(
        _fused_kernel,
        out_shape=jax.ShapeDtypeStruct((1, 1), jnp.float32),
        in_specs=[_vmem] * 7,
        out_specs=_smem,
    )(y1f, y2f, wb_exp, w1p, w2p, w3p, bn_params)
    return out[0, 0]


# -------------------- one-time parameter preparation --------------------
def _pad_lane(w, rows, cols):
    return jnp.pad(w, ((0, rows - w.shape[0]), (0, cols - w.shape[1])))


def prepare_params(backbone_w, w1, w2, w3):
    # Fuse the global average pool into the backbone matmul and pad lanes to 128.
    wb_exp = jnp.repeat(backbone_w / float(HW), HW, axis=0)       # [C*HW, FEAT]
    wb_p = _pad_lane(wb_exp, IN_K, LANE).astype(jnp.bfloat16)     # [1024, 128]
    w1_p = _pad_lane(w1, LANE, LANE).astype(jnp.bfloat16)         # [128, 128]
    w2_p = _pad_lane(w2, LANE, LANE).astype(jnp.bfloat16)
    w3_p = _pad_lane(w3, LANE, LANE).astype(jnp.bfloat16)
    # Packed BN params: rows = [gamma1, beta1, gamma2, beta2] (PyTorch init 1/0);
    # padded gammas are harmless (padded activations are exactly 0), padded betas 0.
    bn_params = jnp.concatenate(
        [
            jnp.ones((1, LANE), jnp.float32),
            jnp.zeros((1, LANE), jnp.float32),
            jnp.ones((1, LANE), jnp.float32),
            jnp.zeros((1, LANE), jnp.float32),
        ],
        axis=0,
    )
    return wb_p, w1_p, w2_p, w3_p, bn_params


if __name__ == "__main__":
    key = jax.random.PRNGKey(0)
    k = jax.random.split(key, 6)

    y1 = jax.random.normal(k[0], (B, C, H, W), dtype=jnp.float32)
    y2 = jax.random.normal(k[1], (B, C, H, W), dtype=jnp.float32)

    # deterministic parameter init (weights stored as [in, out], bias-free linears)
    backbone_w = 0.1 * jax.random.normal(k[2], (C, FEAT), dtype=jnp.float32)
    w1 = 0.1 * jax.random.normal(k[3], (FEAT, D1), dtype=jnp.float32)
    w2 = 0.1 * jax.random.normal(k[4], (D1, D2), dtype=jnp.float32)
    w3 = 0.1 * jax.random.normal(k[5], (D2, D3), dtype=jnp.float32)

    wb_p, w1_p, w2_p, w3_p, bn_params = prepare_params(backbone_w, w1, w2, w3)

    loss = barlow_twins_forward(y1, y2, wb_p, w1_p, w2_p, w3_p, bn_params)
    jax.block_until_ready(loss)
    assert loss.shape == () and jnp.isfinite(loss)
    print("KERNEL_OK")
</pallas_src>

<mosaic_0001>
module attributes {stable_mosaic.version = 11 : i64} {
  func.func @_fused_kernel(%arg0: memref<8x1024xf32, #tpu.memory_space<vmem>>, %arg1: memref<8x1024xf32, #tpu.memory_space<vmem>>, %arg2: memref<1024x128xbf16, #tpu.memory_space<vmem>>, %arg3: memref<128x128xbf16, #tpu.memory_space<vmem>>, %arg4: memref<128x128xbf16, #tpu.memory_space<vmem>>, %arg5: memref<128x128xbf16, #tpu.memory_space<vmem>>, %arg6: memref<4x128xf32, #tpu.memory_space<vmem>>, %arg7: memref<1x1xf32, #tpu.memory_space<smem>>) attributes {dimension_semantics = [], scalar_prefetch = 0 : i64, scratch_operands = 0 : i64, tpu.core_type = #tpu.core_type<tc>} {
    %c0 = arith.constant 0 : index
    %c0_0 = arith.constant 0 : index
    %0 = vector.load %arg0[%c0, %c0_0] : memref<8x1024xf32, #tpu.memory_space<vmem>>, vector<8x1024xf32>
    %c0_1 = arith.constant 0 : index
    %c0_2 = arith.constant 0 : index
    %1 = vector.load %arg1[%c0_1, %c0_2] : memref<8x1024xf32, #tpu.memory_space<vmem>>, vector<8x1024xf32>
    %2 = tpu.concatenate %0, %1 in 0 : vector<8x1024xf32>, vector<8x1024xf32> -> vector<16x1024xf32>
    %3 = arith.truncf %2 : vector<16x1024xf32> to vector<16x1024xbf16>
    %c0_3 = arith.constant 0 : index
    %c0_4 = arith.constant 0 : index
    %4 = vector.load %arg2[%c0_3, %c0_4] : memref<1024x128xbf16, #tpu.memory_space<vmem>>, vector<1024x128xbf16>
    %cst = arith.constant dense<0.000000e+00> : vector<16x128xf32>
    %5 = tpu.matmul %3, %4, %cst {dimension_numbers = #tpu.dot_dimension_numbers<[1], [0], [0], [1], [0, 0, 1, 1], [], []>} : vector<16x1024xbf16>, vector<1024x128xbf16>, vector<16x128xf32> -> vector<16x128xf32>
    %c0_5 = arith.constant 0 : index
    %c0_6 = arith.constant 0 : index
    %6 = vector.load %arg6[%c0_5, %c0_6] : memref<4x128xf32, #tpu.memory_space<vmem>>, vector<4x128xf32>
    %7 = vector.extract_strided_slice %6 {offsets = [0, 0], sizes = [1, 128], strides = [1, 1]} : vector<4x128xf32> to vector<1x128xf32>
    %8 = vector.extract_strided_slice %6 {offsets = [1, 0], sizes = [1, 128], strides = [1, 1]} : vector<4x128xf32> to vector<1x128xf32>
    %9 = vector.extract_strided_slice %6 {offsets = [2, 0], sizes = [1, 128], strides = [1, 1]} : vector<4x128xf32> to vector<1x128xf32>
    %10 = vector.extract_strided_slice %6 {offsets = [3, 0], sizes = [1, 128], strides = [1, 1]} : vector<4x128xf32> to vector<1x128xf32>
    %11 = arith.truncf %5 : vector<16x128xf32> to vector<16x128xbf16>
    %c0_7 = arith.constant 0 : index
    %c0_8 = arith.constant 0 : index
    %12 = vector.load %arg3[%c0_7, %c0_8] : memref<128x128xbf16, #tpu.memory_space<vmem>>, vector<128x128xbf16>
    %cst_9 = arith.constant dense<0.000000e+00> : vector<16x128xf32>
    %13 = tpu.matmul %11, %12, %cst_9 {dimension_numbers = #tpu.dot_dimension_numbers<[1], [0], [0], [1], [0, 0, 1, 1], [], []>} : vector<16x128xbf16>, vector<128x128xbf16>, vector<16x128xf32> -> vector<16x128xf32>
    %14 = vector.shape_cast %13 : vector<16x128xf32> to vector<2x8x128xf32>
    %cst_10 = arith.constant dense<0.000000e+00> : vector<2x128xf32>
    %15 = vector.multi_reduction <add>, %14, %cst_10 [1] : vector<2x8x128xf32> to vector<2x128xf32>
    %16 = vector.shape_cast %15 : vector<2x128xf32> to vector<2x1x128xf32>
    %cst_11 = arith.constant 8.000000e+00 : f32
    %17 = vector.broadcast %cst_11 : f32 to vector<2x1x128xf32>
    %18 = arith.divf %16, %17 : vector<2x1x128xf32>
    %19 = arith.mulf %14, %14 : vector<2x8x128xf32>
    %cst_12 = arith.constant dense<0.000000e+00> : vector<2x128xf32>
    %20 = vector.multi_reduction <add>, %19, %cst_12 [1] : vector<2x8x128xf32> to vector<2x128xf32>
    %21 = vector.shape_cast %20 : vector<2x128xf32> to vector<2x1x128xf32>
    %cst_13 = arith.constant 8.000000e+00 : f32
    %22 = vector.broadcast %cst_13 : f32 to vector<2x1x128xf32>
    %23 = arith.divf %21, %22 : vector<2x1x128xf32>
    %24 = arith.mulf %18, %18 : vector<2x1x128xf32>
    %25 = arith.subf %23, %24 : vector<2x1x128xf32>
    %26 = vector.broadcast %18 : vector<2x1x128xf32> to vector<2x8x128xf32>
    %27 = arith.subf %14, %26 : vector<2x8x128xf32>
    %cst_14 = arith.constant 9.99999974E-6 : f32
    %28 = vector.broadcast %cst_14 : f32 to vector<2x1x128xf32>
    %29 = arith.addf %25, %28 : vector<2x1x128xf32>
    %30 = math.rsqrt %29 : vector<2x1x128xf32>
    %31 = vector.broadcast %30 : vector<2x1x128xf32> to vector<2x8x128xf32>
    %32 = arith.mulf %27, %31 : vector<2x8x128xf32>
    %33 = vector.shape_cast %32 : vector<2x8x128xf32> to vector<16x128xf32>
    %34 = vector.broadcast %7 : vector<1x128xf32> to vector<16x128xf32>
    %35 = arith.mulf %33, %34 : vector<16x128xf32>
    %36 = vector.broadcast %8 : vector<1x128xf32> to vector<16x128xf32>
    %37 = arith.addf %35, %36 : vector<16x128xf32>
    %cst_15 = arith.constant 0.000000e+00 : f32
    %38 = vector.broadcast %cst_15 : f32 to vector<16x128xf32>
    %39 = arith.maximumf %37, %38 : vector<16x128xf32>
    %40 = arith.truncf %39 : vector<16x128xf32> to vector<16x128xbf16>
    %c0_16 = arith.constant 0 : index
    %c0_17 = arith.constant 0 : index
    %41 = vector.load %arg4[%c0_16, %c0_17] : memref<128x128xbf16, #tpu.memory_space<vmem>>, vector<128x128xbf16>
    %cst_18 = arith.constant dense<0.000000e+00> : vector<16x128xf32>
    %42 = tpu.matmul %40, %41, %cst_18 {dimension_numbers = #tpu.dot_dimension_numbers<[1], [0], [0], [1], [0, 0, 1, 1], [], []>} : vector<16x128xbf16>, vector<128x128xbf16>, vector<16x128xf32> -> vector<16x128xf32>
    %43 = vector.shape_cast %42 : vector<16x128xf32> to vector<2x8x128xf32>
    %cst_19 = arith.constant dense<0.000000e+00> : vector<2x128xf32>
    %44 = vector.multi_reduction <add>, %43, %cst_19 [1] : vector<2x8x128xf32> to vector<2x128xf32>
    %45 = vector.shape_cast %44 : vector<2x128xf32> to vector<2x1x128xf32>
    %cst_20 = arith.constant 8.000000e+00 : f32
    %46 = vector.broadcast %cst_20 : f32 to vector<2x1x128xf32>
    %47 = arith.divf %45, %46 : vector<2x1x128xf32>
    %48 = arith.mulf %43, %43 : vector<2x8x128xf32>
    %cst_21 = arith.constant dense<0.000000e+00> : vector<2x128xf32>
    %49 = vector.multi_reduction <add>, %48, %cst_21 [1] : vector<2x8x128xf32> to vector<2x128xf32>
    %50 = vector.shape_cast %49 : vector<2x128xf32> to vector<2x1x128xf32>
    %cst_22 = arith.constant 8.000000e+00 : f32
    %51 = vector.broadcast %cst_22 : f32 to vector<2x1x128xf32>
    %52 = arith.divf %50, %51 : vector<2x1x128xf32>
    %53 = arith.mulf %47, %47 : vector<2x1x128xf32>
    %54 = arith.subf %52, %53 : vector<2x1x128xf32>
    %55 = vector.broadcast %47 : vector<2x1x128xf32> to vector<2x8x128xf32>
    %56 = arith.subf %43, %55 : vector<2x8x128xf32>
    %cst_23 = arith.constant 9.99999974E-6 : f32
    %57 = vector.broadcast %cst_23 : f32 to vector<2x1x128xf32>
    %58 = arith.addf %54, %57 : vector<2x1x128xf32>
    %59 = math.rsqrt %58 : vector<2x1x128xf32>
    %60 = vector.broadcast %59 : vector<2x1x128xf32> to vector<2x8x128xf32>
    %61 = arith.mulf %56, %60 : vector<2x8x128xf32>
    %62 = vector.shape_cast %61 : vector<2x8x128xf32> to vector<16x128xf32>
    %63 = vector.broadcast %9 : vector<1x128xf32> to vector<16x128xf32>
    %64 = arith.mulf %62, %63 : vector<16x128xf32>
    %65 = vector.broadcast %10 : vector<1x128xf32> to vector<16x128xf32>
    %66 = arith.addf %64, %65 : vector<16x128xf32>
    %cst_24 = arith.constant 0.000000e+00 : f32
    %67 = vector.broadcast %cst_24 : f32 to vector<16x128xf32>
    %68 = arith.maximumf %66, %67 : vector<16x128xf32>
    %69 = arith.truncf %68 : vector<16x128xf32> to vector<16x128xbf16>
    %c0_25 = arith.constant 0 : index
    %c0_26 = arith.constant 0 : index
    %70 = vector.load %arg5[%c0_25, %c0_26] : memref<128x128xbf16, #tpu.memory_space<vmem>>, vector<128x128xbf16>
    %cst_27 = arith.constant dense<0.000000e+00> : vector<16x128xf32>
    %71 = tpu.matmul %69, %70, %cst_27 {dimension_numbers = #tpu.dot_dimension_numbers<[1], [0], [0], [1], [0, 0, 1, 1], [], []>} : vector<16x128xbf16>, vector<128x128xbf16>, vector<16x128xf32> -> vector<16x128xf32>
    %72 = vector.shape_cast %71 : vector<16x128xf32> to vector<2x8x128xf32>
    %cst_28 = arith.constant dense<0.000000e+00> : vector<2x128xf32>
    %73 = vector.multi_reduction <add>, %72, %cst_28 [1] : vector<2x8x128xf32> to vector<2x128xf32>
    %74 = vector.shape_cast %73 : vector<2x128xf32> to vector<2x1x128xf32>
    %cst_29 = arith.constant 8.000000e+00 : f32
    %75 = vector.broadcast %cst_29 : f32 to vector<2x1x128xf32>
    %76 = arith.divf %74, %75 : vector<2x1x128xf32>
    %77 = arith.mulf %72, %72 : vector<2x8x128xf32>
    %cst_30 = arith.constant dense<0.000000e+00> : vector<2x128xf32>
    %78 = vector.multi_reduction <add>, %77, %cst_30 [1] : vector<2x8x128xf32> to vector<2x128xf32>
    %79 = vector.shape_cast %78 : vector<2x128xf32> to vector<2x1x128xf32>
    %cst_31 = arith.constant 8.000000e+00 : f32
    %80 = vector.broadcast %cst_31 : f32 to vector<2x1x128xf32>
    %81 = arith.divf %79, %80 : vector<2x1x128xf32>
    %82 = arith.mulf %76, %76 : vector<2x1x128xf32>
    %83 = arith.subf %81, %82 : vector<2x1x128xf32>
    %84 = vector.broadcast %76 : vector<2x1x128xf32> to vector<2x8x128xf32>
    %85 = arith.subf %72, %84 : vector<2x8x128xf32>
    %cst_32 = arith.constant 9.99999974E-6 : f32
    %86 = vector.broadcast %cst_32 : f32 to vector<2x1x128xf32>
    %87 = arith.addf %83, %86 : vector<2x1x128xf32>
    %88 = math.rsqrt %87 : vector<2x1x128xf32>
    %89 = vector.broadcast %88 : vector<2x1x128xf32> to vector<2x8x128xf32>
    %90 = arith.mulf %85, %89 : vector<2x8x128xf32>
    %91 = vector.shape_cast %90 : vector<2x8x128xf32> to vector<16x128xf32>
    %92 = vector.extract_strided_slice %91 {offsets = [0, 0], sizes = [8, 128], strides = [1, 1]} : vector<16x128xf32> to vector<8x128xf32>
    %93 = vector.extract_strided_slice %91 {offsets = [8, 0], sizes = [8, 128], strides = [1, 1]} : vector<16x128xf32> to vector<8x128xf32>
    %cst_33 = arith.constant dense<0.000000e+00> : vector<128x128xf32>
    %94 = tpu.matmul %92, %93, %cst_33 {dimension_numbers = #tpu.dot_dimension_numbers<[0], [0], [1], [1], [0, 1, 1, 1], [], []>} : vector<8x128xf32>, vector<8x128xf32>, vector<128x128xf32> -> vector<128x128xf32>
    %cst_34 = arith.constant 1.250000e-01 : f32
    %95 = vector.broadcast %cst_34 : f32 to vector<128x128xf32>
    %96 = arith.mulf %94, %95 : vector<128x128xf32>
    %97 = tpu.iota {dimensions = array<i32: 0>} : vector<128x128xi32>
    %98 = tpu.iota {dimensions = array<i32: 1>} : vector<128x128xi32>
    %99 = arith.cmpi eq, %97, %98 : vector<128x128xi32>
    %c32_i32 = arith.constant 32 : i32
    %100 = vector.broadcast %c32_i32 : i32 to vector<128x128xi32>
    %101 = arith.cmpi slt, %97, %100 : vector<128x128xi32>
    %102 = arith.andi %99, %101 : vector<128x128xi1>
    %103 = arith.mulf %96, %96 : vector<128x128xf32>
    %104 = vector.shape_cast %103 : vector<128x128xf32> to vector<1x128x128xf32>
    %cst_35 = arith.constant dense<0.000000e+00> : vector<1xf32>
    %105 = vector.multi_reduction <add>, %104, %cst_35 [1, 2] : vector<1x128x128xf32> to vector<1xf32>
    %106 = vector.shape_cast %105 : vector<1xf32> to vector<1x1x1xf32>
    %107 = vector.extract %106[0, 0, 0] : f32 from vector<1x1x1xf32>
    %cst_36 = arith.constant 1.000000e+00 : f32
    %108 = vector.broadcast %cst_36 : f32 to vector<128x128xf32>
    %109 = arith.subf %96, %108 : vector<128x128xf32>
    %cst_37 = arith.constant 1.000000e+00 : f32
    %110 = vector.broadcast %cst_37 : f32 to vector<128x128xf32>
    %111 = arith.subf %96, %110 : vector<128x128xf32>
    %112 = arith.mulf %109, %111 : vector<128x128xf32>
    %cst_38 = arith.constant 5.100000e-03 : f32
    %113 = vector.broadcast %cst_38 : f32 to vector<128x128xf32>
    %114 = arith.mulf %113, %96 : vector<128x128xf32>
    %115 = arith.mulf %114, %96 : vector<128x128xf32>
    %116 = arith.subf %112, %115 : vector<128x128xf32>
    %cst_39 = arith.constant 0.000000e+00 : f32
    %117 = vector.broadcast %cst_39 : f32 to vector<128x128xf32>
    %118 = arith.select %102, %116, %117 : vector<128x128xi1>, vector<128x128xf32>
    %119 = vector.shape_cast %118 : vector<128x128xf32> to vector<1x128x128xf32>
    %cst_40 = arith.constant dense<0.000000e+00> : vector<1xf32>
    %120 = vector.multi_reduction <add>, %119, %cst_40 [1, 2] : vector<1x128x128xf32> to vector<1xf32>
    %121 = vector.shape_cast %120 : vector<1xf32> to vector<1x1x1xf32>
    %122 = vector.extract %121[0, 0, 0] : f32 from vector<1x1x1xf32>
    %cst_41 = arith.constant 5.100000e-03 : f32
    %123 = arith.mulf %cst_41, %107 : f32
    %124 = arith.addf %123, %122 : f32
    %c0_42 = arith.constant 0 : index
    %c0_43 = arith.constant 0 : index
    %125 = memref.load %arg7[%c0_42, %c0_43] : memref<1x1xf32, #tpu.memory_space<smem>>
    memref.store %124, %arg7[%c0_42, %c0_43] : memref<1x1xf32, #tpu.memory_space<smem>>
    return
  }
}

</mosaic_0001>

<llo_original>
// kernel: tpu_custom_call.1
$region0: #{tpu_custom_call.1}
  #allocation0 [shape = 'u32[]', space=smem, size = 0x4, offset = 0x4, fixed_abs, tag = 'smem constant byte address 0x4 - core index']
  #allocation1 [shape = 'u32[144,128]{1,0:T(1,128)}', space=vmem, size = 0x12000, scoped, tag = 'internal scratch']
  %s0 = inlined_call_operand.hbm [shape: f32[8,1024], index: 0, kind: input, shape index: {}]
  %s1 = inlined_call_operand.hbm [shape: f32[8,1024], index: 1, kind: input, shape index: {}]
  %s2 = inlined_call_operand.hbm [shape: bf16[1024,128], index: 2, kind: input, shape index: {}]
  %s3 = inlined_call_operand.hbm [shape: bf16[128,128], index: 3, kind: input, shape index: {}]
  %s4 = inlined_call_operand.hbm [shape: bf16[128,128], index: 4, kind: input, shape index: {}]
  %s5 = inlined_call_operand.hbm [shape: bf16[128,128], index: 5, kind: input, shape index: {}]
  %s6 = inlined_call_operand.vmem [shape: f32[4,128], index: 6, kind: input, shape index: {}]
  %s7 = inlined_call_operand.hbm [shape: f32[1,1], index: 7, kind: output, shape index: {}]
  %s8 = sld [smem:[#allocation0]]
  $region62: #{tpu_custom_call.1} parent=0
    _
  %s10 = ssub.s32 1, %s8
  %s11 = scalar_select 0, %s10, %s8
  $region1: #{tpu_custom_call.1} parent=0
    #allocation2 [shape = 'u8[32768]{0}', space=vmem, size = 0x8000, scoped, tag = 'input window, operand 0, single buffered']
    #allocation3 [shape = 's32[1]{0}', space=sflag, size = 0x4, scoped, tag = 'scoped memory for tpu_custom_call.1']
    #allocation4 [shape = 's32[1]{0}', space=sflag, size = 0x4, scoped, tag = 'scoped memory for tpu_custom_call.1']
    #allocation5 [shape = 'u8[32768]{0}', space=vmem, size = 0x8000, scoped, tag = 'input window, operand 1, single buffered']
    #allocation6 [shape = 's32[1]{0}', space=sflag, size = 0x4, scoped, tag = 'scoped memory for tpu_custom_call.1']
    #allocation7 [shape = 'u8[262144]{0}', space=vmem, size = 0x40000, scoped, tag = 'input window, operand 2, single buffered']
    #allocation8 [shape = 'u8[32768]{0}', space=vmem, size = 0x8000, scoped, tag = 'input window, operand 3, single buffered']
    #allocation9 [shape = 's32[1]{0}', space=sflag, size = 0x4, scoped, tag = 'scoped memory for tpu_custom_call.1']
    #allocation10 [shape = 'u8[32768]{0}', space=vmem, size = 0x8000, scoped, tag = 'input window, operand 4, single buffered']
    #allocation11 [shape = 'u8[32768]{0}', space=vmem, size = 0x8000, scoped, tag = 'input window, operand 5, single buffered']
    #allocation12 [shape = 's32[1]{0}', space=sflag, size = 0x4, scoped, tag = 'scoped memory for tpu_custom_call.1']
    #allocation13 [shape = 'u8[512]{0}', space=smem, size = 0x200, scoped, tag = 'output window, operand 0, single buffered']
    %12 = vsyncpa [#allocation3], 0
    %13 = vsyncpa [#allocation6], 0
    %14 = vsyncpa [#allocation9], 0
    %15 = vsyncpa [#allocation12], 0
    %16 = vsyncpa [#allocation4], 0
    // Predicated region
    $region2: #{tpu_custom_call.1} parent=1 // pred_check
      _
    $region3: #{tpu_custom_call.1} parent=1 // pred_check_branch
      %18 = sbr.rel (0) target = $region5
    $region4: #{tpu_custom_call.1} parent=1 // pred_region
      %s20 = ssub.s32 1024, 1024
      %21 = vsyncadd [#allocation3], %s20
      %s23 = sshll.u32 [#allocation2], 4
      %s24 = int_to_ptr.vmem [resolvable:$true] %s23
      %26 = dma.hbm_to_vmem [thread:$0]  %s0, 1024, %s24, [#allocation3]
    $region5: #{tpu_custom_call.1} parent=1 // pred_fallthru
      _
    // Predicated region
    $region6: #{tpu_custom_call.1} parent=1 // pred_check
      _
    $region7: #{tpu_custom_call.1} parent=1 // pred_check_branch
      %28 = sbr.rel (0) target = $region9
    $region8: #{tpu_custom_call.1} parent=1 // pred_region
      %s30 = ssub.s32 1024, 1024
      %31 = vsyncadd [#allocation6], %s30
      %s33 = sshll.u32 [#allocation5], 4
      %s34 = int_to_ptr.vmem [resolvable:$true] %s33
      %36 = dma.hbm_to_vmem [thread:$0]  %s1, 1024, %s34, [#allocation6]
    $region9: #{tpu_custom_call.1} parent=1 // pred_fallthru
      _
    // Predicated region
    $region10: #{tpu_custom_call.1} parent=1 // pred_check
      _
    $region11: #{tpu_custom_call.1} parent=1 // pred_check_branch
      %38 = sbr.rel (0) target = $region13
    $region12: #{tpu_custom_call.1} parent=1 // pred_region
      %s40 = ssub.s32 8192, 8192
      %41 = vsyncadd [#allocation6], %s40
      %s42 = sshll.u32 [#allocation7], 4
      %s43 = int_to_ptr.vmem [resolvable:$true] %s42
      %48 = dma.hbm_to_vmem [thread:$0]  %s2, 8192, %s43, [#allocation6], 64, 64, 4
    $region13: #{tpu_custom_call.1} parent=1 // pred_fallthru
      _
    // Predicated region
    $region14: #{tpu_custom_call.1} parent=1 // pred_check
      _
    $region15: #{tpu_custom_call.1} parent=1 // pred_check_branch
      %50 = sbr.rel (0) target = $region17
    $region16: #{tpu_custom_call.1} parent=1 // pred_region
      %s52 = ssub.s32 1024, 1024
      %53 = vsyncadd [#allocation9], %s52
      %s54 = sshll.u32 [#allocation8], 4
      %s55 = int_to_ptr.vmem [resolvable:$true] %s54
      %60 = dma.hbm_to_vmem [thread:$0]  %s3, 1024, %s55, [#allocation9], 64, 64, 4
    $region17: #{tpu_custom_call.1} parent=1 // pred_fallthru
      _
    // Predicated region
    $region18: #{tpu_custom_call.1} parent=1 // pred_check
      _
    $region19: #{tpu_custom_call.1} parent=1 // pred_check_branch
      %62 = sbr.rel (0) target = $region21
    $region20: #{tpu_custom_call.1} parent=1 // pred_region
      %s64 = ssub.s32 1024, 1024
      %65 = vsyncadd [#allocation9], %s64
      %s66 = sshll.u32 [#allocation10], 4
      %s67 = int_to_ptr.vmem [resolvable:$true] %s66
      %72 = dma.hbm_to_vmem [thread:$0]  %s4, 1024, %s67, [#allocation9], 64, 64, 4
    $region21: #{tpu_custom_call.1} parent=1 // pred_fallthru
      _
    // Predicated region
    $region22: #{tpu_custom_call.1} parent=1 // pred_check
      _
    $region23: #{tpu_custom_call.1} parent=1 // pred_check_branch
      %74 = sbr.rel (0) target = $region25
    $region24: #{tpu_custom_call.1} parent=1 // pred_region
      %s76 = ssub.s32 1024, 1024
      %77 = vsyncadd [#allocation12], %s76
      %s78 = sshll.u32 [#allocation11], 4
      %s79 = int_to_ptr.vmem [resolvable:$true] %s78
      %84 = dma.hbm_to_vmem [thread:$0]  %s5, 1024, %s79, [#allocation12], 64, 64, 4
    $region25: #{tpu_custom_call.1} parent=1 // pred_fallthru
      _
    // Predicated region
    $region26: #{tpu_custom_call.1} parent=1 // pred_check
      _
    $region27: #{tpu_custom_call.1} parent=1 // pred_check_branch
      %86 = sbr.rel (0) target = $region29
    $region28: #{tpu_custom_call.1} parent=1 // pred_region
      _
    $region29: #{tpu_custom_call.1} parent=1 // pred_fallthru
      _
    // Predicated region
    $region30: #{tpu_custom_call.1} parent=1 // pred_check
      _
    $region31: #{tpu_custom_call.1} parent=1 // pred_check_branch
      %88 = sbr.rel (0) target = $region33
    $region32: #{tpu_custom_call.1} parent=1 // pred_region
      %89 = dma.done [#allocation3], 1024
    $region33: #{tpu_custom_call.1} parent=1 // pred_fallthru
      _
    // Predicated region
    $region34: #{tpu_custom_call.1} parent=1 // pred_check
      _
    $region35: #{tpu_custom_call.1} parent=1 // pred_check_branch
      %91 = sbr.rel (0) target = $region37
    $region36: #{tpu_custom_call.1} parent=1 // pred_region
      %92 = dma.done [#allocation6], 1024
    $region37: #{tpu_custom_call.1} parent=1 // pred_fallthru
      _
    // Predicated region
    $region38: #{tpu_custom_call.1} parent=1 // pred_check
      _
    $region39: #{tpu_custom_call.1} parent=1 // pred_check_branch
      %94 = sbr.rel (0) target = $region41
    $region40: #{tpu_custom_call.1} parent=1 // pred_region
      %95 = dma.done [#allocation6], 8192
    $region41: #{tpu_custom_call.1} parent=1 // pred_fallthru
      _
    // Predicated region
    $region42: #{tpu_custom_call.1} parent=1 // pred_check
      _
    $region43: #{tpu_custom_call.1} parent=1 // pred_check_branch
      %97 = sbr.rel (0) target = $region45
    $region44: #{tpu_custom_call.1} parent=1 // pred_region
      %98 = dma.done [#allocation9], 1024
    $region45: #{tpu_custom_call.1} parent=1 // pred_fallthru
      _
    // Predicated region
    $region46: #{tpu_custom_call.1} parent=1 // pred_check
      _
    $region47: #{tpu_custom_call.1} parent=1 // pred_check_branch
      %100 = sbr.rel (0) target = $region49
    $region48: #{tpu_custom_call.1} parent=1 // pred_region
      %101 = dma.done [#allocation9], 1024
    $region49: #{tpu_custom_call.1} parent=1 // pred_fallthru
      _
    // Predicated region
    $region50: #{tpu_custom_call.1} parent=1 // pred_check
      _
    $region51: #{tpu_custom_call.1} parent=1 // pred_check_branch
      %103 = sbr.rel (0) target = $region53
    $region52: #{tpu_custom_call.1} parent=1 // pred_region
      %104 = dma.done [#allocation12], 1024
    $region53: #{tpu_custom_call.1} parent=1 // pred_fallthru
      _
    %v106 = vld [vmem:[#allocation2] sm:$0xff]
    %v107 = vld [vmem:[#allocation2 + $0x8] sm:$0xff]
    %v108 = vld [vmem:[#allocation2 + $0x10] sm:$0xff]
    %v109 = vld [vmem:[#allocation2 + $0x18] sm:$0xff]
    %v110 = vld [vmem:[#allocation2 + $0x20] sm:$0xff]
    %v111 = vld [vmem:[#allocation2 + $0x28] sm:$0xff]
    %v112 = vld [vmem:[#allocation2 + $0x30] sm:$0xff]
    %v113 = vld [vmem:[#allocation2 + $0x38] sm:$0xff]
    %v114 = vld [vmem:[#allocation5] sm:$0xff]
    %v115 = vld [vmem:[#allocation5 + $0x8] sm:$0xff]
    %v116 = vld [vmem:[#allocation5 + $0x10] sm:$0xff]
    %v117 = vld [vmem:[#allocation5 + $0x18] sm:$0xff]
    %v118 = vld [vmem:[#allocation5 + $0x20] sm:$0xff]
    %v119 = vld [vmem:[#allocation5 + $0x28] sm:$0xff]
    %v120 = vld [vmem:[#allocation5 + $0x30] sm:$0xff]
    %v121 = vld [vmem:[#allocation5 + $0x38] sm:$0xff]
    %v122 = vpack.c.bf16 %v114, %v106
    %v123 = vpack.c.bf16 %v115, %v107
    %v124 = vpack.c.bf16 %v116, %v108
    %v125 = vpack.c.bf16 %v117, %v109
    %v126 = vpack.c.bf16 %v118, %v110
    %v127 = vpack.c.bf16 %v119, %v111
    %v128 = vpack.c.bf16 %v120, %v112
    %v129 = vpack.c.bf16 %v121, %v113
    %v130 = vld [vmem:[#allocation7] sm:$0xf]
    %v131 = vld [vmem:[#allocation7 + $0x4] sm:$0xf]
    %v132 = vld [vmem:[#allocation7 + $0x8] sm:$0xf]
    %v133 = vld [vmem:[#allocation7 + $0xc] sm:$0xf]
    %v134 = vld [vmem:[#allocation7 + $0x10] sm:$0xf]
    %v135 = vld [vmem:[#allocation7 + $0x14] sm:$0xf]
    %v136 = vld [vmem:[#allocation7 + $0x18] sm:$0xf]
    %v137 = vld [vmem:[#allocation7 + $0x1c] sm:$0xf]
    %v138 = vld [vmem:[#allocation7 + $0x20] sm:$0xf]
    %v139 = vld [vmem:[#allocation7 + $0x24] sm:$0xf]
    %v140 = vld [vmem:[#allocation7 + $0x28] sm:$0xf]
    %v141 = vld [vmem:[#allocation7 + $0x2c] sm:$0xf]
    %v142 = vld [vmem:[#allocation7 + $0x30] sm:$0xf]
    %v143 = vld [vmem:[#allocation7 + $0x34] sm:$0xf]
    %v144 = vld [vmem:[#allocation7 + $0x38] sm:$0xf]
    %v145 = vld [vmem:[#allocation7 + $0x3c] sm:$0xf]
    %v146 = vld [vmem:[#allocation7 + $0x40] sm:$0xf]
    %v147 = vld [vmem:[#allocation7 + $0x44] sm:$0xf]
    %v148 = vld [vmem:[#allocation7 + $0x48] sm:$0xf]
    %v149 = vld [vmem:[#allocation7 + $0x4c] sm:$0xf]
    %v150 = vld [vmem:[#allocation7 + $0x50] sm:$0xf]
    %v151 = vld [vmem:[#allocation7 + $0x54] sm:$0xf]
    %v152 = vld [vmem:[#allocation7 + $0x58] sm:$0xf]
    %v153 = vld [vmem:[#allocation7 + $0x5c] sm:$0xf]
    %v154 = vld [vmem:[#allocation7 + $0x60] sm:$0xf]
    %v155 = vld [vmem:[#allocation7 + $0x64] sm:$0xf]
    %v156 = vld [vmem:[#allocation7 + $0x68] sm:$0xf]
    %v157 = vld [vmem:[#allocation7 + $0x6c] sm:$0xf]
    %v158 = vld [vmem:[#allocation7 + $0x70] sm:$0xf]
    %v159 = vld [vmem:[#allocation7 + $0x74] sm:$0xf]
    %v160 = vld [vmem:[#allocation7 + $0x78] sm:$0xf]
    %v161 = vld [vmem:[#allocation7 + $0x7c] sm:$0xf]
    %v162 = vld [vmem:[#allocation7 + $0x80] sm:$0xf]
    %v163 = vld [vmem:[#allocation7 + $0x84] sm:$0xf]
    %v164 = vld [vmem:[#allocation7 + $0x88] sm:$0xf]
    %v165 = vld [vmem:[#allocation7 + $0x8c] sm:$0xf]
    %v166 = vld [vmem:[#allocation7 + $0x90] sm:$0xf]
    %v167 = vld [vmem:[#allocation7 + $0x94] sm:$0xf]
    %v168 = vld [vmem:[#allocation7 + $0x98] sm:$0xf]
    %v169 = vld [vmem:[#allocation7 + $0x9c] sm:$0xf]
    %v170 = vld [vmem:[#allocation7 + $0xa0] sm:$0xf]
    %v171 = vld [vmem:[#allocation7 + $0xa4] sm:$0xf]
    %v172 = vld [vmem:[#allocation7 + $0xa8] sm:$0xf]
    %v173 = vld [vmem:[#allocation7 + $0xac] sm:$0xf]
    %v174 = vld [vmem:[#allocation7 + $0xb0] sm:$0xf]
    %v175 = vld [vmem:[#allocation7 + $0xb4] sm:$0xf]
    %v176 = vld [vmem:[#allocation7 + $0xb8] sm:$0xf]
    %v177 = vld [vmem:[#allocation7 + $0xbc] sm:$0xf]
    %v178 = vld [vmem:[#allocation7 + $0xc0] sm:$0xf]
    %v179 = vld [vmem:[#allocation7 + $0xc4] sm:$0xf]
    %v180 = vld [vmem:[#allocation7 + $0xc8] sm:$0xf]
    %v181 = vld [vmem:[#allocation7 + $0xcc] sm:$0xf]
    %v182 = vld [vmem:[#allocation7 + $0xd0] sm:$0xf]
    %v183 = vld [vmem:[#allocation7 + $0xd4] sm:$0xf]
    %v184 = vld [vmem:[#allocation7 + $0xd8] sm:$0xf]
    %v185 = vld [vmem:[#allocation7 + $0xdc] sm:$0xf]
    %v186 = vld [vmem:[#allocation7 + $0xe0] sm:$0xf]
    %v187 = vld [vmem:[#allocation7 + $0xe4] sm:$0xf]
    %v188 = vld [vmem:[#allocation7 + $0xe8] sm:$0xf]
    %v189 = vld [vmem:[#allocation7 + $0xec] sm:$0xf]
    %v190 = vld [vmem:[#allocation7 + $0xf0] sm:$0xf]
    %v191 = vld [vmem:[#allocation7 + $0xf4] sm:$0xf]
    %v192 = vld [vmem:[#allocation7 + $0xf8] sm:$0xf]
    %v193 = vld [vmem:[#allocation7 + $0xfc] sm:$0xf]
    %v194 = vld [vmem:[#allocation7 + $0x100] sm:$0xf]
    %v195 = vld [vmem:[#allocation7 + $0x104] sm:$0xf]
    %v196 = vld [vmem:[#allocation7 + $0x108] sm:$0xf]
    %v197 = vld [vmem:[#allocation7 + $0x10c] sm:$0xf]
    %v198 = vld [vmem:[#allocation7 + $0x110] sm:$0xf]
    %v199 = vld [vmem:[#allocation7 + $0x114] sm:$0xf]
    %v200 = vld [vmem:[#allocation7 + $0x118] sm:$0xf]
    %v201 = vld [vmem:[#allocation7 + $0x11c] sm:$0xf]
    %v202 = vld [vmem:[#allocation7 + $0x120] sm:$0xf]
    %v203 = vld [vmem:[#allocation7 + $0x124] sm:$0xf]
    %v204 = vld [vmem:[#allocation7 + $0x128] sm:$0xf]
    %v205 = vld [vmem:[#allocation7 + $0x12c] sm:$0xf]
    %v206 = vld [vmem:[#allocation7 + $0x130] sm:$0xf]
    %v207 = vld [vmem:[#allocation7 + $0x134] sm:$0xf]
    %v208 = vld [vmem:[#allocation7 + $0x138] sm:$0xf]
    %v209 = vld [vmem:[#allocation7 + $0x13c] sm:$0xf]
    %v210 = vld [vmem:[#allocation7 + $0x140] sm:$0xf]
    %v211 = vld [vmem:[#allocation7 + $0x144] sm:$0xf]
    %v212 = vld [vmem:[#allocation7 + $0x148] sm:$0xf]
    %v213 = vld [vmem:[#allocation7 + $0x14c] sm:$0xf]
    %v214 = vld [vmem:[#allocation7 + $0x150] sm:$0xf]
    %v215 = vld [vmem:[#allocation7 + $0x154] sm:$0xf]
    %v216 = vld [vmem:[#allocation7 + $0x158] sm:$0xf]
    %v217 = vld [vmem:[#allocation7 + $0x15c] sm:$0xf]
    %v218 = vld [vmem:[#allocation7 + $0x160] sm:$0xf]
    %v219 = vld [vmem:[#allocation7 + $0x164] sm:$0xf]
    %v220 = vld [vmem:[#allocation7 + $0x168] sm:$0xf]
    %v221 = vld [vmem:[#allocation7 + $0x16c] sm:$0xf]
    %v222 = vld [vmem:[#allocation7 + $0x170] sm:$0xf]
    %v223 = vld [vmem:[#allocation7 + $0x174] sm:$0xf]
    %v224 = vld [vmem:[#allocation7 + $0x178] sm:$0xf]
    %v225 = vld [vmem:[#allocation7 + $0x17c] sm:$0xf]
    %v226 = vld [vmem:[#allocation7 + $0x180] sm:$0xf]
    %v227 = vld [vmem:[#allocation7 + $0x184] sm:$0xf]
    %v228 = vld [vmem:[#allocation7 + $0x188] sm:$0xf]
    %v229 = vld [vmem:[#allocation7 + $0x18c] sm:$0xf]
    %v230 = vld [vmem:[#allocation7 + $0x190] sm:$0xf]
    %v231 = vld [vmem:[#allocation7 + $0x194] sm:$0xf]
    %v232 = vld [vmem:[#allocation7 + $0x198] sm:$0xf]
    %v233 = vld [vmem:[#allocation7 + $0x19c] sm:$0xf]
    %v234 = vld [vmem:[#allocation7 + $0x1a0] sm:$0xf]
    %v235 = vld [vmem:[#allocation7 + $0x1a4] sm:$0xf]
    %v236 = vld [vmem:[#allocation7 + $0x1a8] sm:$0xf]
    %v237 = vld [vmem:[#allocation7 + $0x1ac] sm:$0xf]
    %v238 = vld [vmem:[#allocation7 + $0x1b0] sm:$0xf]
    %v239 = vld [vmem:[#allocation7 + $0x1b4] sm:$0xf]
    %v240 = vld [vmem:[#allocation7 + $0x1b8] sm:$0xf]
    %v241 = vld [vmem:[#allocation7 + $0x1bc] sm:$0xf]
    %v242 = vld [vmem:[#allocation7 + $0x1c0] sm:$0xf]
    %v243 = vld [vmem:[#allocation7 + $0x1c4] sm:$0xf]
    %v244 = vld [vmem:[#allocation7 + $0x1c8] sm:$0xf]
    %v245 = vld [vmem:[#allocation7 + $0x1cc] sm:$0xf]
    %v246 = vld [vmem:[#allocation7 + $0x1d0] sm:$0xf]
    %v247 = vld [vmem:[#allocation7 + $0x1d4] sm:$0xf]
    %v248 = vld [vmem:[#allocation7 + $0x1d8] sm:$0xf]
    %v249 = vld [vmem:[#allocation7 + $0x1dc] sm:$0xf]
    %v250 = vld [vmem:[#allocation7 + $0x1e0] sm:$0xf]
    %v251 = vld [vmem:[#allocation7 + $0x1e4] sm:$0xf]
    %v252 = vld [vmem:[#allocation7 + $0x1e8] sm:$0xf]
    %v253 = vld [vmem:[#allocation7 + $0x1ec] sm:$0xf]
    %v254 = vld [vmem:[#allocation7 + $0x1f0] sm:$0xf]
    %v255 = vld [vmem:[#allocation7 + $0x1f4] sm:$0xf]
    %v256 = vld [vmem:[#allocation7 + $0x1f8] sm:$0xf]
    %v257 = vld [vmem:[#allocation7 + $0x1fc] sm:$0xf]
    %v386 = vunpack.c.l.b16 %v130
    %v387 = vunpack.c.l.b16 %v131
    %v388 = vunpack.c.l.b16 %v132
    %v389 = vunpack.c.l.b16 %v133
    %v390 = vunpack.c.l.b16 %v134
    %v391 = vunpack.c.l.b16 %v135
    %v392 = vunpack.c.l.b16 %v136
    %v393 = vunpack.c.l.b16 %v137
    %v394 = vunpack.c.l.b16 %v138
    %v395 = vunpack.c.l.b16 %v139
    %v396 = vunpack.c.l.b16 %v140
    %v397 = vunpack.c.l.b16 %v141
    %v398 = vunpack.c.l.b16 %v142
    %v399 = vunpack.c.l.b16 %v143
    %v400 = vunpack.c.l.b16 %v144
    %v401 = vunpack.c.l.b16 %v145
    %v402 = vunpack.c.l.b16 %v146
    %v403 = vunpack.c.l.b16 %v147
    %v404 = vunpack.c.l.b16 %v148
    %v405 = vunpack.c.l.b16 %v149
    %v406 = vunpack.c.l.b16 %v150
    %v407 = vunpack.c.l.b16 %v151
    %v408 = vunpack.c.l.b16 %v152
    %v409 = vunpack.c.l.b16 %v153
    %v410 = vunpack.c.l.b16 %v154
    %v411 = vunpack.c.l.b16 %v155
    %v412 = vunpack.c.l.b16 %v156
    %v413 = vunpack.c.l.b16 %v157
    %v414 = vunpack.c.l.b16 %v158
    %v415 = vunpack.c.l.b16 %v159
    %v416 = vunpack.c.l.b16 %v160
    %v417 = vunpack.c.l.b16 %v161
    %v418 = vunpack.c.l.b16 %v162
    %v419 = vunpack.c.l.b16 %v163
    %v420 = vunpack.c.l.b16 %v164
    %v421 = vunpack.c.l.b16 %v165
    %v422 = vunpack.c.l.b16 %v166
    %v423 = vunpack.c.l.b16 %v167
    %v424 = vunpack.c.l.b16 %v168
    %v425 = vunpack.c.l.b16 %v169
    %v426 = vunpack.c.l.b16 %v170
    %v427 = vunpack.c.l.b16 %v171
    %v428 = vunpack.c.l.b16 %v172
    %v429 = vunpack.c.l.b16 %v173
    %v430 = vunpack.c.l.b16 %v174
    %v431 = vunpack.c.l.b16 %v175
    %v432 = vunpack.c.l.b16 %v176
    %v433 = vunpack.c.l.b16 %v177
    %v434 = vunpack.c.l.b16 %v178
    %v435 = vunpack.c.l.b16 %v179
    %v436 = vunpack.c.l.b16 %v180
    %v437 = vunpack.c.l.b16 %v181
    %v438 = vunpack.c.l.b16 %v182
    %v439 = vunpack.c.l.b16 %v183
    %v440 = vunpack.c.l.b16 %v184
    %v441 = vunpack.c.l.b16 %v185
    %v442 = vunpack.c.l.b16 %v186
    %v443 = vunpack.c.l.b16 %v187
    %v444 = vunpack.c.l.b16 %v188
    %v445 = vunpack.c.l.b16 %v189
    %v446 = vunpack.c.l.b16 %v190
    %v447 = vunpack.c.l.b16 %v191
    %v448 = vunpack.c.l.b16 %v192
    %v449 = vunpack.c.l.b16 %v193
    %v450 = vunpack.c.l.b16 %v194
    %v451 = vunpack.c.l.b16 %v195
    %v452 = vunpack.c.l.b16 %v196
    %v453 = vunpack.c.l.b16 %v197
    %v454 = vunpack.c.l.b16 %v198
    %v455 = vunpack.c.l.b16 %v199
    %v456 = vunpack.c.l.b16 %v200
    %v457 = vunpack.c.l.b16 %v201
    %v458 = vunpack.c.l.b16 %v202
    %v459 = vunpack.c.l.b16 %v203
    %v460 = vunpack.c.l.b16 %v204
    %v461 = vunpack.c.l.b16 %v205
    %v462 = vunpack.c.l.b16 %v206
    %v463 = vunpack.c.l.b16 %v207
    %v464 = vunpack.c.l.b16 %v208
    %v465 = vunpack.c.l.b16 %v209
    %v466 = vunpack.c.l.b16 %v210
    %v467 = vunpack.c.l.b16 %v211
    %v468 = vunpack.c.l.b16 %v212
    %v469 = vunpack.c.l.b16 %v213
    %v470 = vunpack.c.l.b16 %v214
    %v471 = vunpack.c.l.b16 %v215
    %v472 = vunpack.c.l.b16 %v216
    %v473 = vunpack.c.l.b16 %v217
    %v474 = vunpack.c.l.b16 %v218
    %v475 = vunpack.c.l.b16 %v219
    %v476 = vunpack.c.l.b16 %v220
    %v477 = vunpack.c.l.b16 %v221
    %v478 = vunpack.c.l.b16 %v222
    %v479 = vunpack.c.l.b16 %v223
    %v480 = vunpack.c.l.b16 %v224
    %v481 = vunpack.c.l.b16 %v225
    %v482 = vunpack.c.l.b16 %v226
    %v483 = vunpack.c.l.b16 %v227
    %v484 = vunpack.c.l.b16 %v228
    %v485 = vunpack.c.l.b16 %v229
    %v486 = vunpack.c.l.b16 %v230
    %v487 = vunpack.c.l.b16 %v231
    %v488 = vunpack.c.l.b16 %v232
    %v489 = vunpack.c.l.b16 %v233
    %v490 = vunpack.c.l.b16 %v234
    %v491 = vunpack.c.l.b16 %v235
    %v492 = vunpack.c.l.b16 %v236
    %v493 = vunpack.c.l.b16 %v237
    %v494 = vunpack.c.l.b16 %v238
    %v495 = vunpack.c.l.b16 %v239
    %v496 = vunpack.c.l.b16 %v240
    %v497 = vunpack.c.l.b16 %v241
    %v498 = vunpack.c.l.b16 %v242
    %v499 = vunpack.c.l.b16 %v243
    %v500 = vunpack.c.l.b16 %v244
    %v501 = vunpack.c.l.b16 %v245
    %v502 = vunpack.c.l.b16 %v246
    %v503 = vunpack.c.l.b16 %v247
    %v504 = vunpack.c.l.b16 %v248
    %v505 = vunpack.c.l.b16 %v249
    %v506 = vunpack.c.l.b16 %v250
    %v507 = vunpack.c.l.b16 %v251
    %v508 = vunpack.c.l.b16 %v252
    %v509 = vunpack.c.l.b16 %v253
    %v510 = vunpack.c.l.b16 %v254
    %v511 = vunpack.c.l.b16 %v255
    %v512 = vunpack.c.l.b16 %v256
    %v513 = vunpack.c.l.b16 %v257
    %v514 = vpack.c.b16 %v387, %v386
    %v515 = vpack.c.b16 %v389, %v388
    %v516 = vpack.c.b16 %v391, %v390
    %v517 = vpack.c.b16 %v393, %v392
    %v518 = vpack.c.b16 %v395, %v394
    %v519 = vpack.c.b16 %v397, %v396
    %v520 = vpack.c.b16 %v399, %v398
    %v521 = vpack.c.b16 %v401, %v400
    %v522 = vpack.c.b16 %v403, %v402
    %v523 = vpack.c.b16 %v405, %v404
    %v524 = vpack.c.b16 %v407, %v406
    %v525 = vpack.c.b16 %v409, %v408
    %v526 = vpack.c.b16 %v411, %v410
    %v527 = vpack.c.b16 %v413, %v412
    %v528 = vpack.c.b16 %v415, %v414
    %v529 = vpack.c.b16 %v417, %v416
    %v530 = vpack.c.b16 %v419, %v418
    %v531 = vpack.c.b16 %v421, %v420
    %v532 = vpack.c.b16 %v423, %v422
    %v533 = vpack.c.b16 %v425, %v424
    %v534 = vpack.c.b16 %v427, %v426
    %v535 = vpack.c.b16 %v429, %v428
    %v536 = vpack.c.b16 %v431, %v430
    %v537 = vpack.c.b16 %v433, %v432
    %v538 = vpack.c.b16 %v435, %v434
    %v539 = vpack.c.b16 %v437, %v436
    %v540 = vpack.c.b16 %v439, %v438
    %v541 = vpack.c.b16 %v441, %v440
    %v542 = vpack.c.b16 %v443, %v442
    %v543 = vpack.c.b16 %v445, %v444
    %v544 = vpack.c.b16 %v447, %v446
    %v545 = vpack.c.b16 %v449, %v448
    %v546 = vpack.c.b16 %v451, %v450
    %v547 = vpack.c.b16 %v453, %v452
    %v548 = vpack.c.b16 %v455, %v454
    %v549 = vpack.c.b16 %v457, %v456
    %v550 = vpack.c.b16 %v459, %v458
    %v551 = vpack.c.b16 %v461, %v460
    %v552 = vpack.c.b16 %v463, %v462
    %v553 = vpack.c.b16 %v465, %v464
    %v554 = vpack.c.b16 %v467, %v466
    %v555 = vpack.c.b16 %v469, %v468
    %v556 = vpack.c.b16 %v471, %v470
    %v557 = vpack.c.b16 %v473, %v472
    %v558 = vpack.c.b16 %v475, %v474
    %v559 = vpack.c.b16 %v477, %v476
    %v560 = vpack.c.b16 %v479, %v478
    %v561 = vpack.c.b16 %v481, %v480
    %v562 = vpack.c.b16 %v483, %v482
    %v563 = vpack.c.b16 %v485, %v484
    %v564 = vpack.c.b16 %v487, %v486
    %v565 = vpack.c.b16 %v489, %v488
    %v566 = vpack.c.b16 %v491, %v490
    %v567 = vpack.c.b16 %v493, %v492
    %v568 = vpack.c.b16 %v495, %v494
    %v569 = vpack.c.b16 %v497, %v496
    %v570 = vpack.c.b16 %v499, %v498
    %v571 = vpack.c.b16 %v501, %v500
    %v572 = vpack.c.b16 %v503, %v502
    %v573 = vpack.c.b16 %v505, %v504
    %v574 = vpack.c.b16 %v507, %v506
    %v575 = vpack.c.b16 %v509, %v508
    %v576 = vpack.c.b16 %v511, %v510
    %v577 = vpack.c.b16 %v513, %v512
    %642 = vmatprep.subr.bf16.mxu0 0
    %643 = vmatpush1.bf16.msra.mxu0 %v514
    %644 = vmatprep.subr.bf16.mxu0 0
    %645 = vmatpush1.bf16.msra.mxu0 %v515
    %646 = vmatprep.subr.bf16.mxu0 0
    %647 = vmatpush1.bf16.msra.mxu0 %v516
    %648 = vmatprep.subr.bf16.mxu0 0
    %649 = vmatpush1.bf16.msra.mxu0 %v517
    %650 = vmatprep.subr.bf16.mxu0 0
    %651 = vmatpush1.bf16.msra.mxu0 %v518
    %652 = vmatprep.subr.bf16.mxu0 0
    %653 = vmatpush1.bf16.msra.mxu0 %v519
    %654 = vmatprep.subr.bf16.mxu0 0
    %655 = vmatpush1.bf16.msra.mxu0 %v520
    %656 = vmatprep.subr.bf16.mxu0 0
    %657 = vmatpush1.bf16.msra.mxu0 %v521
    %658 = vmatprep.subr.bf16.mxu0 0
    %659 = vmatpush1.bf16.msra.mxu0 %v522
    %660 = vmatprep.subr.bf16.mxu0 0
    %661 = vmatpush1.bf16.msra.mxu0 %v523
    %662 = vmatprep.subr.bf16.mxu0 0
    %663 = vmatpush1.bf16.msra.mxu0 %v524
    %664 = vmatprep.subr.bf16.mxu0 0
    %665 = vmatpush1.bf16.msra.mxu0 %v525
    %666 = vmatprep.subr.bf16.mxu0 0
    %667 = vmatpush1.bf16.msra.mxu0 %v526
    %668 = vmatprep.subr.bf16.mxu0 0
    %669 = vmatpush1.bf16.msra.mxu0 %v527
    %670 = vmatprep.subr.bf16.mxu0 0
    %671 = vmatpush1.bf16.msra.mxu0 %v528
    %672 = vmatprep.subr.bf16.mxu0 0
    %673 = vmatpush1.bf16.msra.mxu0 %v529
    %674 = vmatprep.mubr.bf16.mxu0 %v123
    %675 = vmatmul.mubr.bf16.gmra.mrb[0].mxu0 %v122
    %v676 = vpop.f32.mrb[0].mxu0
    %v677 = vadd.f32 0.0, %v676
    %v678 = vpop.f32.mrb[0].mxu0
    %v679 = vpop.f32.mrb[0].mxu0
    %v680 = vadd.f32 0.0, %v679
    %v681 = vpop.f32.mrb[0].mxu0
    %682 = vdwg.mxu0
    %683 = vmatprep.subr.bf16.mxu0 0
    %684 = vmatpush1.bf16.msra.mxu0 %v530
    %685 = vmatprep.subr.bf16.mxu0 0
    %686 = vmatpush1.bf16.msra.mxu0 %v531
    %687 = vmatprep.subr.bf16.mxu0 0
    %688 = vmatpush1.bf16.msra.mxu0 %v532
    %689 = vmatprep.subr.bf16.mxu0 0
    %690 = vmatpush1.bf16.msra.mxu0 %v533
    %691 = vmatprep.subr.bf16.mxu0 0
    %692 = vmatpush1.bf16.msra.mxu0 %v534
    %693 = vmatprep.subr.bf16.mxu0 0
    %694 = vmatpush1.bf16.msra.mxu0 %v535
    %695 = vmatprep.subr.bf16.mxu0 0
    %696 = vmatpush1.bf16.msra.mxu0 %v536
    %697 = vmatprep.subr.bf16.mxu0 0
    %698 = vmatpush1.bf16.msra.mxu0 %v537
    %699 = vmatprep.subr.bf16.mxu0 0
    %700 = vmatpush1.bf16.msra.mxu0 %v538
    %701 = vmatprep.subr.bf16.mxu0 0
    %702 = vmatpush1.bf16.msra.mxu0 %v539
    %703 = vmatprep.subr.bf16.mxu0 0
    %704 = vmatpush1.bf16.msra.mxu0 %v540
    %705 = vmatprep.subr.bf16.mxu0 0
    %706 = vmatpush1.bf16.msra.mxu0 %v541
    %707 = vmatprep.subr.bf16.mxu0 0
    %708 = vmatpush1.bf16.msra.mxu0 %v542
    %709 = vmatprep.subr.bf16.mxu0 0
    %710 = vmatpush1.bf16.msra.mxu0 %v543
    %711 = vmatprep.subr.bf16.mxu0 0
    %712 = vmatpush1.bf16.msra.mxu0 %v544
    %713 = vmatprep.subr.bf16.mxu0 0
    %714 = vmatpush1.bf16.msra.mxu0 %v545
    %715 = vmatprep.mubr.bf16.mxu0 %v125
    %716 = vmatmul.mubr.bf16.gmra.mrb[0].mxu0 %v124
    %v717 = vpop.f32.mrb[0].mxu0
    %v718 = vadd.f32 %v677, %v717
    %v719 = vpop.f32.mrb[0].mxu0
    %v720 = vpop.f32.mrb[0].mxu0
    %v721 = vadd.f32 %v680, %v720
    %v722 = vpop.f32.mrb[0].mxu0
    %723 = vdwg.mxu0
    %724 = vmatprep.subr.bf16.mxu0 0
    %725 = vmatpush1.bf16.msra.mxu0 %v546
    %726 = vmatprep.subr.bf16.mxu0 0
    %727 = vmatpush1.bf16.msra.mxu0 %v547
    %728 = vmatprep.subr.bf16.mxu0 0
    %729 = vmatpush1.bf16.msra.mxu0 %v548
    %730 = vmatprep.subr.bf16.mxu0 0
    %731 = vmatpush1.bf16.msra.mxu0 %v549
    %732 = vmatprep.subr.bf16.mxu0 0
    %733 = vmatpush1.bf16.msra.mxu0 %v550
    %734 = vmatprep.subr.bf16.mxu0 0
    %735 = vmatpush1.bf16.msra.mxu0 %v551
    %736 = vmatprep.subr.bf16.mxu0 0
    %737 = vmatpush1.bf16.msra.mxu0 %v552
    %738 = vmatprep.subr.bf16.mxu0 0
    %739 = vmatpush1.bf16.msra.mxu0 %v553
    %740 = vmatprep.subr.bf16.mxu0 0
    %741 = vmatpush1.bf16.msra.mxu0 %v554
    %742 = vmatprep.subr.bf16.mxu0 0
    %743 = vmatpush1.bf16.msra.mxu0 %v555
    %744 = vmatprep.subr.bf16.mxu0 0
    %745 = vmatpush1.bf16.msra.mxu0 %v556
    %746 = vmatprep.subr.bf16.mxu0 0
    %747 = vmatpush1.bf16.msra.mxu0 %v557
    %748 = vmatprep.subr.bf16.mxu0 0
    %749 = vmatpush1.bf16.msra.mxu0 %v558
    %750 = vmatprep.subr.bf16.mxu0 0
    %751 = vmatpush1.bf16.msra.mxu0 %v559
    %752 = vmatprep.subr.bf16.mxu0 0
    %753 = vmatpush1.bf16.msra.mxu0 %v560
    %754 = vmatprep.subr.bf16.mxu0 0
    %755 = vmatpush1.bf16.msra.mxu0 %v561
    %756 = vmatprep.mubr.bf16.mxu0 %v127
    %757 = vmatmul.mubr.bf16.gmra.mrb[0].mxu0 %v126
    %v758 = vpop.f32.mrb[0].mxu0
    %v759 = vadd.f32 %v718, %v758
    %v760 = vpop.f32.mrb[0].mxu0
    %v761 = vpop.f32.mrb[0].mxu0
    %v762 = vadd.f32 %v721, %v761
    %v763 = vpop.f32.mrb[0].mxu0
    %764 = vdwg.mxu0
    %765 = vmatprep.subr.bf16.mxu0 0
    %766 = vmatpush1.bf16.msra.mxu0 %v562
    %767 = vmatprep.subr.bf16.mxu0 0
    %768 = vmatpush1.bf16.msra.mxu0 %v563
    %769 = vmatprep.subr.bf16.mxu0 0
    %770 = vmatpush1.bf16.msra.mxu0 %v564
    %771 = vmatprep.subr.bf16.mxu0 0
    %772 = vmatpush1.bf16.msra.mxu0 %v565
    %773 = vmatprep.subr.bf16.mxu0 0
    %774 = vmatpush1.bf16.msra.mxu0 %v566
    %775 = vmatprep.subr.bf16.mxu0 0
    %776 = vmatpush1.bf16.msra.mxu0 %v567
    %777 = vmatprep.subr.bf16.mxu0 0
    %778 = vmatpush1.bf16.msra.mxu0 %v568
    %779 = vmatprep.subr.bf16.mxu0 0
    %780 = vmatpush1.bf16.msra.mxu0 %v569
    %781 = vmatprep.subr.bf16.mxu0 0
    %782 = vmatpush1.bf16.msra.mxu0 %v570
    %783 = vmatprep.subr.bf16.mxu0 0
    %784 = vmatpush1.bf16.msra.mxu0 %v571
    %785 = vmatprep.subr.bf16.mxu0 0
    %786 = vmatpush1.bf16.msra.mxu0 %v572
    %787 = vmatprep.subr.bf16.mxu0 0
    %788 = vmatpush1.bf16.msra.mxu0 %v573
    %789 = vmatprep.subr.bf16.mxu0 0
    %790 = vmatpush1.bf16.msra.mxu0 %v574
    %791 = vmatprep.subr.bf16.mxu0 0
    %792 = vmatpush1.bf16.msra.mxu0 %v575
    %793 = vmatprep.subr.bf16.mxu0 0
    %794 = vmatpush1.bf16.msra.mxu0 %v576
    %795 = vmatprep.subr.bf16.mxu0 0
    %796 = vmatpush1.bf16.msra.mxu0 %v577
    %797 = vmatprep.mubr.bf16.mxu0 %v129
    %798 = vmatmul.mubr.bf16.gmra.mrb[0].mxu0 %v128
    %v799 = vpop.f32.mrb[0].mxu0
    %v800 = vadd.f32 %v759, %v799
    %v801 = vpop.f32.mrb[0].mxu0
    %v802 = vpop.f32.mrb[0].mxu0
    %v803 = vadd.f32 %v762, %v802
    %v804 = vpop.f32.mrb[0].mxu0
    %805 = vdwg.mxu0
    %v806 = vld [vmem:[%s6] sm:$0xf]
    %v807 = vpack.c.bf16 %v803, %v800
    %v808 = vld [vmem:[#allocation8] sm:$0xf]
    %v809 = vld [vmem:[#allocation8 + $0x4] sm:$0xf]
    %v810 = vld [vmem:[#allocation8 + $0x8] sm:$0xf]
    %v811 = vld [vmem:[#allocation8 + $0xc] sm:$0xf]
    %v812 = vld [vmem:[#allocation8 + $0x10] sm:$0xf]
    %v813 = vld [vmem:[#allocation8 + $0x14] sm:$0xf]
    %v814 = vld [vmem:[#allocation8 + $0x18] sm:$0xf]
    %v815 = vld [vmem:[#allocation8 + $0x1c] sm:$0xf]
    %v816 = vld [vmem:[#allocation8 + $0x20] sm:$0xf]
    %v817 = vld [vmem:[#allocation8 + $0x24] sm:$0xf]
    %v818 = vld [vmem:[#allocation8 + $0x28] sm:$0xf]
    %v819 = vld [vmem:[#allocation8 + $0x2c] sm:$0xf]
    %v820 = vld [vmem:[#allocation8 + $0x30] sm:$0xf]
    %v821 = vld [vmem:[#allocation8 + $0x34] sm:$0xf]
    %v822 = vld [vmem:[#allocation8 + $0x38] sm:$0xf]
    %v823 = vld [vmem:[#allocation8 + $0x3c] sm:$0xf]
    %v840 = vunpack.c.l.b16 %v808
    %v841 = vunpack.c.l.b16 %v809
    %v842 = vunpack.c.l.b16 %v810
    %v843 = vunpack.c.l.b16 %v811
    %v844 = vunpack.c.l.b16 %v812
    %v845 = vunpack.c.l.b16 %v813
    %v846 = vunpack.c.l.b16 %v814
    %v847 = vunpack.c.l.b16 %v815
    %v848 = vunpack.c.l.b16 %v816
    %v849 = vunpack.c.l.b16 %v817
    %v850 = vunpack.c.l.b16 %v818
    %v851 = vunpack.c.l.b16 %v819
    %v852 = vunpack.c.l.b16 %v820
    %v853 = vunpack.c.l.b16 %v821
    %v854 = vunpack.c.l.b16 %v822
    %v855 = vunpack.c.l.b16 %v823
    %v856 = vpack.c.b16 %v841, %v840
    %v857 = vpack.c.b16 %v843, %v842
    %v858 = vpack.c.b16 %v845, %v844
    %v859 = vpack.c.b16 %v847, %v846
    %v860 = vpack.c.b16 %v849, %v848
    %v861 = vpack.c.b16 %v851, %v850
    %v862 = vpack.c.b16 %v853, %v852
    %v863 = vpack.c.b16 %v855, %v854
    %872 = vmatprep.subr.bf16.mxu0 0
    %873 = vmatpush1.bf16.msra.mxu0 %v856
    %874 = vmatprep.subr.bf16.mxu0 0
    %875 = vmatpush1.bf16.msra.mxu0 %v857
    %876 = vmatprep.subr.bf16.mxu0 0
    %877 = vmatpush1.bf16.msra.mxu0 %v858
    %878 = vmatprep.subr.bf16.mxu0 0
    %879 = vmatpush1.bf16.msra.mxu0 %v859
    %880 = vmatprep.subr.bf16.mxu0 0
    %881 = vmatpush1.bf16.msra.mxu0 %v860
    %882 = vmatprep.subr.bf16.mxu0 0
    %883 = vmatpush1.bf16.msra.mxu0 %v861
    %884 = vmatprep.subr.bf16.mxu0 0
    %885 = vmatpush1.bf16.msra.mxu0 %v862
    %886 = vmatprep.subr.bf16.mxu0 0
    %887 = vmatpush1.bf16.msra.mxu0 %v863
    %888 = vmatprep.subr.bf16.mxu0 0
    %889 = vmatpush1.bf16.msra.mxu0 0
    %890 = vmatprep.subr.bf16.mxu0 0
    %891 = vmatpush1.bf16.msra.mxu0 0
    %892 = vmatprep.subr.bf16.mxu0 0
    %893 = vmatpush1.bf16.msra.mxu0 0
    %894 = vmatprep.subr.bf16.mxu0 0
    %895 = vmatpush1.bf16.msra.mxu0 0
    %896 = vmatprep.subr.bf16.mxu0 0
    %897 = vmatpush1.bf16.msra.mxu0 0
    %898 = vmatprep.subr.bf16.mxu0 0
    %899 = vmatpush1.bf16.msra.mxu0 0
    %900 = vmatprep.subr.bf16.mxu0 0
    %901 = vmatpush1.bf16.msra.mxu0 0
    %902 = vmatprep.subr.bf16.mxu0 0
    %903 = vmatpush1.bf16.msra.mxu0 0
    %904 = vmatprep.mubr.bf16.mxu0 0
    %905 = vmatmul.mubr.bf16.gmra.mrb[0].mxu0 %v807
    %v906 = vpop.f32.mrb[0].mxu0
    %v907 = vadd.f32 0.0, %v906
    %v908 = vpop.f32.mrb[0].mxu0
    %v909 = vpop.f32.mrb[0].mxu0
    %v910 = vadd.f32 0.0, %v909
    %v911 = vpop.f32.mrb[0].mxu0
    %912 = vdwg.mxu0
    %v913 = vrot.slane %v907, 4
    %v914 = vadd.f32 %v907, %v913
    %v915 = vrot.slane %v914, 2
    %v916 = vadd.f32 %v914, %v915
    %v917 = vrot.slane %v916, 1
    %v918 = vadd.f32 %v916, %v917
    %v919 = vrot.slane %v910, 4
    %v920 = vadd.f32 %v910, %v919
    %v921 = vrot.slane %v920, 2
    %v922 = vadd.f32 %v920, %v921
    %v923 = vrot.slane %v922, 1
    %v924 = vadd.f32 %v922, %v923
    %v925 = vrcp.pop 8.0
    %v926 = vmul.f32 %v918, %v925
    %v927 = vmul.f32 %v924, %v925
    %v928 = vmul.f32 %v907, %v907
    %v929 = vmul.f32 %v910, %v910
    %v930 = vrot.slane %v928, 4
    %v931 = vadd.f32 %v928, %v930
    %v932 = vrot.slane %v931, 2
    %v933 = vadd.f32 %v931, %v932
    %v934 = vrot.slane %v933, 1
    %v935 = vadd.f32 %v933, %v934
    %v936 = vrot.slane %v929, 4
    %v937 = vadd.f32 %v929, %v936
    %v938 = vrot.slane %v937, 2
    %v939 = vadd.f32 %v937, %v938
    %v940 = vrot.slane %v939, 1
    %v941 = vadd.f32 %v939, %v940
    %v942 = vmul.f32 %v935, %v925
    %v943 = vmul.f32 %v941, %v925
    %v944 = vmul.f32 %v926, %v926
    %v945 = vmul.f32 %v927, %v927
    %v946 = vsub.f32 %v942, %v944
    %v947 = vsub.f32 %v943, %v945
    %v948 = vsub.f32 %v907, %v926
    %v949 = vsub.f32 %v910, %v927
    %v950 = vadd.f32 %v946, 1e-05
    %v951 = vadd.f32 %v947, 1e-05
    %v952 = vrsqrt.pop %v950
    %v953 = vrsqrt.pop %v951
    %v954 = vmul.f32 %v948, %v952
    %v955 = vmul.f32 %v949, %v953
    %v956 = vlaneseq
    %v957 = vshrl.u32 %v956, 7
    %v958 = vsub.s32 0, %v957
    %v959 = vrot.slane %v806, %v958
    %v960 = vmul.f32 %v954, %v959
    %v961 = vmul.f32 %v955, %v959
    %v962 = vlaneseq
    %v963 = vshrl.u32 %v962, 7
    %v964 = vsub.s32 1, %v963
    %v965 = vrot.slane %v806, %v964
    %v966 = vadd.f32 %v960, %v965
    %v967 = vadd.f32 %v961, %v965
    %v968 = vmax.f32 %v966, 0.0
    %v969 = vmax.f32 %v967, 0.0
    %v970 = vpack.c.bf16 %v969, %v968
    %v971 = vld [vmem:[#allocation10] sm:$0xf]
    %v972 = vld [vmem:[#allocation10 + $0x4] sm:$0xf]
    %v973 = vld [vmem:[#allocation10 + $0x8] sm:$0xf]
    %v974 = vld [vmem:[#allocation10 + $0xc] sm:$0xf]
    %v975 = vld [vmem:[#allocation10 + $0x10] sm:$0xf]
    %v976 = vld [vmem:[#allocation10 + $0x14] sm:$0xf]
    %v977 = vld [vmem:[#allocation10 + $0x18] sm:$0xf]
    %v978 = vld [vmem:[#allocation10 + $0x1c] sm:$0xf]
    %v979 = vld [vmem:[#allocation10 + $0x20] sm:$0xf]
    %v980 = vld [vmem:[#allocation10 + $0x24] sm:$0xf]
    %v981 = vld [vmem:[#allocation10 + $0x28] sm:$0xf]
    %v982 = vld [vmem:[#allocation10 + $0x2c] sm:$0xf]
    %v983 = vld [vmem:[#allocation10 + $0x30] sm:$0xf]
    %v984 = vld [vmem:[#allocation10 + $0x34] sm:$0xf]
    %v985 = vld [vmem:[#allocation10 + $0x38] sm:$0xf]
    %v986 = vld [vmem:[#allocation10 + $0x3c] sm:$0xf]
    %v1003 = vunpack.c.l.b16 %v971
    %v1004 = vunpack.c.l.b16 %v972
    %v1005 = vunpack.c.l.b16 %v973
    %v1006 = vunpack.c.l.b16 %v974
    %v1007 = vunpack.c.l.b16 %v975
    %v1008 = vunpack.c.l.b16 %v976
    %v1009 = vunpack.c.l.b16 %v977
    %v1010 = vunpack.c.l.b16 %v978
    %v1011 = vunpack.c.l.b16 %v979
    %v1012 = vunpack.c.l.b16 %v980
    %v1013 = vunpack.c.l.b16 %v981
    %v1014 = vunpack.c.l.b16 %v982
    %v1015 = vunpack.c.l.b16 %v983
    %v1016 = vunpack.c.l.b16 %v984
    %v1017 = vunpack.c.l.b16 %v985
    %v1018 = vunpack.c.l.b16 %v986
    %v1019 = vpack.c.b16 %v1004, %v1003
    %v1020 = vpack.c.b16 %v1006, %v1005
    %v1021 = vpack.c.b16 %v1008, %v1007
    %v1022 = vpack.c.b16 %v1010, %v1009
    %v1023 = vpack.c.b16 %v1012, %v1011
    %v1024 = vpack.c.b16 %v1014, %v1013
    %v1025 = vpack.c.b16 %v1016, %v1015
    %v1026 = vpack.c.b16 %v1018, %v1017
    %1035 = vmatprep.subr.bf16.mxu0 0
    %1036 = vmatpush1.bf16.msra.mxu0 %v1019
    %1037 = vmatprep.subr.bf16.mxu0 0
    %1038 = vmatpush1.bf16.msra.mxu0 %v1020
    %1039 = vmatprep.subr.bf16.mxu0 0
    %1040 = vmatpush1.bf16.msra.mxu0 %v1021
    %1041 = vmatprep.subr.bf16.mxu0 0
    %1042 = vmatpush1.bf16.msra.mxu0 %v1022
    %1043 = vmatprep.subr.bf16.mxu0 0
    %1044 = vmatpush1.bf16.msra.mxu0 %v1023
    %1045 = vmatprep.subr.bf16.mxu0 0
    %1046 = vmatpush1.bf16.msra.mxu0 %v1024
    %1047 = vmatprep.subr.bf16.mxu0 0
    %1048 = vmatpush1.bf16.msra.mxu0 %v1025
    %1049 = vmatprep.subr.bf16.mxu0 0
    %1050 = vmatpush1.bf16.msra.mxu0 %v1026
    %1051 = vmatprep.subr.bf16.mxu0 0
    %1052 = vmatpush1.bf16.msra.mxu0 0
    %1053 = vmatprep.subr.bf16.mxu0 0
    %1054 = vmatpush1.bf16.msra.mxu0 0
    %1055 = vmatprep.subr.bf16.mxu0 0
    %1056 = vmatpush1.bf16.msra.mxu0 0
    %1057 = vmatprep.subr.bf16.mxu0 0
    %1058 = vmatpush1.bf16.msra.mxu0 0
    %1059 = vmatprep.subr.bf16.mxu0 0
    %1060 = vmatpush1.bf16.msra.mxu0 0
    %1061 = vmatprep.subr.bf16.mxu0 0
    %1062 = vmatpush1.bf16.msra.mxu0 0
    %1063 = vmatprep.subr.bf16.mxu0 0
    %1064 = vmatpush1.bf16.msra.mxu0 0
    %1065 = vmatprep.subr.bf16.mxu0 0
    %1066 = vmatpush1.bf16.msra.mxu0 0
    %1067 = vmatprep.mubr.bf16.mxu0 0
    %1068 = vmatmul.mubr.bf16.gmra.mrb[0].mxu0 %v970
    %v1069 = vpop.f32.mrb[0].mxu0
    %v1070 = vadd.f32 0.0, %v1069
    %v1071 = vpop.f32.mrb[0].mxu0
    %v1072 = vpop.f32.mrb[0].mxu0
    %v1073 = vadd.f32 0.0, %v1072
    %v1074 = vpop.f32.mrb[0].mxu0
    %1075 = vdwg.mxu0
    %v1076 = vrot.slane %v1070, 4
    %v1077 = vadd.f32 %v1070, %v1076
    %v1078 = vrot.slane %v1077, 2
    %v1079 = vadd.f32 %v1077, %v1078
    %v1080 = vrot.slane %v1079, 1
    %v1081 = vadd.f32 %v1079, %v1080
    %v1082 = vrot.slane %v1073, 4
    %v1083 = vadd.f32 %v1073, %v1082
    %v1084 = vrot.slane %v1083, 2
    %v1085 = vadd.f32 %v1083, %v1084
    %v1086 = vrot.slane %v1085, 1
    %v1087 = vadd.f32 %v1085, %v1086
    %v1088 = vmul.f32 %v1081, %v925
    %v1089 = vmul.f32 %v1087, %v925
    %v1090 = vmul.f32 %v1070, %v1070
    %v1091 = vmul.f32 %v1073, %v1073
    %v1092 = vrot.slane %v1090, 4
    %v1093 = vadd.f32 %v1090, %v1092
    %v1094 = vrot.slane %v1093, 2
    %v1095 = vadd.f32 %v1093, %v1094
    %v1096 = vrot.slane %v1095, 1
    %v1097 = vadd.f32 %v1095, %v1096
    %v1098 = vrot.slane %v1091, 4
    %v1099 = vadd.f32 %v1091, %v1098
    %v1100 = vrot.slane %v1099, 2
    %v1101 = vadd.f32 %v1099, %v1100
    %v1102 = vrot.slane %v1101, 1
    %v1103 = vadd.f32 %v1101, %v1102
    %v1104 = vmul.f32 %v1097, %v925
    %v1105 = vmul.f32 %v1103, %v925
    %v1106 = vmul.f32 %v1088, %v1088
    %v1107 = vmul.f32 %v1089, %v1089
    %v1108 = vsub.f32 %v1104, %v1106
    %v1109 = vsub.f32 %v1105, %v1107
    %v1110 = vsub.f32 %v1070, %v1088
    %v1111 = vsub.f32 %v1073, %v1089
    %v1112 = vadd.f32 %v1108, 1e-05
    %v1113 = vadd.f32 %v1109, 1e-05
    %v1114 = vrsqrt.pop %v1112
    %v1115 = vrsqrt.pop %v1113
    %v1116 = vmul.f32 %v1110, %v1114
    %v1117 = vmul.f32 %v1111, %v1115
    %v1118 = vlaneseq
    %v1119 = vshrl.u32 %v1118, 7
    %v1120 = vsub.s32 2, %v1119
    %v1121 = vrot.slane %v806, %v1120
    %v1122 = vmul.f32 %v1116, %v1121
    %v1123 = vmul.f32 %v1117, %v1121
    %v1124 = vlaneseq
    %v1125 = vshrl.u32 %v1124, 7
    %v1126 = vsub.s32 3, %v1125
    %v1127 = vrot.slane %v806, %v1126
    %v1128 = vadd.f32 %v1122, %v1127
    %v1129 = vadd.f32 %v1123, %v1127
    %v1130 = vmax.f32 %v1128, 0.0
    %v1131 = vmax.f32 %v1129, 0.0
    %v1132 = vpack.c.bf16 %v1131, %v1130
    %v1133 = vld [vmem:[#allocation11] sm:$0xf]
    %v1134 = vld [vmem:[#allocation11 + $0x4] sm:$0xf]
    %v1135 = vld [vmem:[#allocation11 + $0x8] sm:$0xf]
    %v1136 = vld [vmem:[#allocation11 + $0xc] sm:$0xf]
    %v1137 = vld [vmem:[#allocation11 + $0x10] sm:$0xf]
    %v1138 = vld [vmem:[#allocation11 + $0x14] sm:$0xf]
    %v1139 = vld [vmem:[#allocation11 + $0x18] sm:$0xf]
    %v1140 = vld [vmem:[#allocation11 + $0x1c] sm:$0xf]
    %v1141 = vld [vmem:[#allocation11 + $0x20] sm:$0xf]
    %v1142 = vld [vmem:[#allocation11 + $0x24] sm:$0xf]
    %v1143 = vld [vmem:[#allocation11 + $0x28] sm:$0xf]
    %v1144 = vld [vmem:[#allocation11 + $0x2c] sm:$0xf]
    %v1145 = vld [vmem:[#allocation11 + $0x30] sm:$0xf]
    %v1146 = vld [vmem:[#allocation11 + $0x34] sm:$0xf]
    %v1147 = vld [vmem:[#allocation11 + $0x38] sm:$0xf]
    %v1148 = vld [vmem:[#allocation11 + $0x3c] sm:$0xf]
    %v1165 = vunpack.c.l.b16 %v1133
    %v1166 = vunpack.c.l.b16 %v1134
    %v1167 = vunpack.c.l.b16 %v1135
    %v1168 = vunpack.c.l.b16 %v1136
    %v1169 = vunpack.c.l.b16 %v1137
    %v1170 = vunpack.c.l.b16 %v1138
    %v1171 = vunpack.c.l.b16 %v1139
    %v1172 = vunpack.c.l.b16 %v1140
    %v1173 = vunpack.c.l.b16 %v1141
    %v1174 = vunpack.c.l.b16 %v1142
    %v1175 = vunpack.c.l.b16 %v1143
    %v1176 = vunpack.c.l.b16 %v1144
    %v1177 = vunpack.c.l.b16 %v1145
    %v1178 = vunpack.c.l.b16 %v1146
    %v1179 = vunpack.c.l.b16 %v1147
    %v1180 = vunpack.c.l.b16 %v1148
    %v1181 = vpack.c.b16 %v1166, %v1165
    %v1182 = vpack.c.b16 %v1168, %v1167
    %v1183 = vpack.c.b16 %v1170, %v1169
    %v1184 = vpack.c.b16 %v1172, %v1171
    %v1185 = vpack.c.b16 %v1174, %v1173
    %v1186 = vpack.c.b16 %v1176, %v1175
    %v1187 = vpack.c.b16 %v1178, %v1177
    %v1188 = vpack.c.b16 %v1180, %v1179
    %1197 = vmatprep.subr.bf16.mxu0 0
    %1198 = vmatpush1.bf16.msra.mxu0 %v1181
    %1199 = vmatprep.subr.bf16.mxu0 0
    %1200 = vmatpush1.bf16.msra.mxu0 %v1182
    %1201 = vmatprep.subr.bf16.mxu0 0
    %1202 = vmatpush1.bf16.msra.mxu0 %v1183
    %1203 = vmatprep.subr.bf16.mxu0 0
    %1204 = vmatpush1.bf16.msra.mxu0 %v1184
    %1205 = vmatprep.subr.bf16.mxu0 0
    %1206 = vmatpush1.bf16.msra.mxu0 %v1185
    %1207 = vmatprep.subr.bf16.mxu0 0
    %1208 = vmatpush1.bf16.msra.mxu0 %v1186
    %1209 = vmatprep.subr.bf16.mxu0 0
    %1210 = vmatpush1.bf16.msra.mxu0 %v1187
    %1211 = vmatprep.subr.bf16.mxu0 0
    %1212 = vmatpush1.bf16.msra.mxu0 %v1188
    %1213 = vmatprep.subr.bf16.mxu0 0
    %1214 = vmatpush1.bf16.msra.mxu0 0
    %1215 = vmatprep.subr.bf16.mxu0 0
    %1216 = vmatpush1.bf16.msra.mxu0 0
    %1217 = vmatprep.subr.bf16.mxu0 0
    %1218 = vmatpush1.bf16.msra.mxu0 0
    %1219 = vmatprep.subr.bf16.mxu0 0
    %1220 = vmatpush1.bf16.msra.mxu0 0
    %1221 = vmatprep.subr.bf16.mxu0 0
    %1222 = vmatpush1.bf16.msra.mxu0 0
    %1223 = vmatprep.subr.bf16.mxu0 0
    %1224 = vmatpush1.bf16.msra.mxu0 0
    %1225 = vmatprep.subr.bf16.mxu0 0
    %1226 = vmatpush1.bf16.msra.mxu0 0
    %1227 = vmatprep.subr.bf16.mxu0 0
    %1228 = vmatpush1.bf16.msra.mxu0 0
    %1229 = vmatprep.mubr.bf16.mxu0 0
    %1230 = vmatmul.mubr.bf16.gmra.mrb[0].mxu0 %v1132
    %v1231 = vpop.f32.mrb[0].mxu0
    %v1232 = vadd.f32 0.0, %v1231
    %v1233 = vpop.f32.mrb[0].mxu0
    %v1234 = vpop.f32.mrb[0].mxu0
    %v1235 = vadd.f32 0.0, %v1234
    %v1236 = vpop.f32.mrb[0].mxu0
    %1237 = vdwg.mxu0
    %v1238 = vrot.slane %v1232, 4
    %v1239 = vadd.f32 %v1232, %v1238
    %v1240 = vrot.slane %v1239, 2
    %v1241 = vadd.f32 %v1239, %v1240
    %v1242 = vrot.slane %v1241, 1
    %v1243 = vadd.f32 %v1241, %v1242
    %v1244 = vrot.slane %v1235, 4
    %v1245 = vadd.f32 %v1235, %v1244
    %v1246 = vrot.slane %v1245, 2
    %v1247 = vadd.f32 %v1245, %v1246
    %v1248 = vrot.slane %v1247, 1
    %v1249 = vadd.f32 %v1247, %v1248
    %v1250 = vmul.f32 %v1243, %v925
    %v1251 = vmul.f32 %v1249, %v925
    %v1252 = vmul.f32 %v1232, %v1232
    %v1253 = vmul.f32 %v1235, %v1235
    %v1254 = vrot.slane %v1252, 4
    %v1255 = vadd.f32 %v1252, %v1254
    %v1256 = vrot.slane %v1255, 2
    %v1257 = vadd.f32 %v1255, %v1256
    %v1258 = vrot.slane %v1257, 1
    %v1259 = vadd.f32 %v1257, %v1258
    %v1260 = vrot.slane %v1253, 4
    %v1261 = vadd.f32 %v1253, %v1260
    %v1262 = vrot.slane %v1261, 2
    %v1263 = vadd.f32 %v1261, %v1262
    %v1264 = vrot.slane %v1263, 1
    %v1265 = vadd.f32 %v1263, %v1264
    %v1266 = vmul.f32 %v1259, %v925
    %v1267 = vmul.f32 %v1265, %v925
    %v1268 = vmul.f32 %v1250, %v1250
    %v1269 = vmul.f32 %v1251, %v1251
    %v1270 = vsub.f32 %v1266, %v1268
    %v1271 = vsub.f32 %v1267, %v1269
    %v1272 = vsub.f32 %v1232, %v1250
    %v1273 = vsub.f32 %v1235, %v1251
    %v1274 = vadd.f32 %v1270, 1e-05
    %v1275 = vadd.f32 %v1271, 1e-05
    %v1276 = vrsqrt.pop %v1274
    %v1277 = vrsqrt.pop %v1275
    %v1278 = vmul.f32 %v1272, %v1276
    %v1279 = vmul.f32 %v1273, %v1277
    %1280 = vxpose.xlu0.b32.start [1/16] %v1278, 128
    %1281 = vxpose.xlu0.b32.cont [2/16] 0.0, 128
    %1282 = vxpose.xlu0.b32.cont [3/16] 0.0, 128
    %1283 = vxpose.xlu0.b32.cont [4/16] 0.0, 128
    %1284 = vxpose.xlu0.b32.cont [5/16] 0.0, 128
    %1285 = vxpose.xlu0.b32.cont [6/16] 0.0, 128
    %1286 = vxpose.xlu0.b32.cont [7/16] 0.0, 128
    %1287 = vxpose.xlu0.b32.cont [8/16] 0.0, 128
    %1288 = vxpose.xlu0.b32.cont [9/16] 0.0, 128
    %1289 = vxpose.xlu0.b32.cont [10/16] 0.0, 128
    %1290 = vxpose.xlu0.b32.cont [11/16] 0.0, 128
    %1291 = vxpose.xlu0.b32.cont [12/16] 0.0, 128
    %1292 = vxpose.xlu0.b32.cont [13/16] 0.0, 128
    %1293 = vxpose.xlu0.b32.cont [14/16] 0.0, 128
    %1294 = vxpose.xlu0.b32.cont [15/16] 0.0, 128
    %1295 = vxpose.xlu0.b32.end [16/16] 0.0, 128
    %v1296 = vpop.trf.xlu0
    %v1297 = vpop.trf.xlu0
    %v1298 = vpop.trf.xlu0
    %v1299 = vpop.trf.xlu0
    %v1300 = vpop.trf.xlu0
    %v1301 = vpop.trf.xlu0
    %v1302 = vpop.trf.xlu0
    %v1303 = vpop.trf.xlu0
    %v1304 = vpop.trf.xlu0
    %v1305 = vpop.trf.xlu0
    %v1306 = vpop.trf.xlu0
    %v1307 = vpop.trf.xlu0
    %v1308 = vpop.trf.xlu0
    %v1309 = vpop.trf.xlu0
    %v1310 = vpop.trf.xlu0
    %v1311 = vpop.trf.xlu0
    %vm1312 = vcmask 64512
    %v1314 = vsel %vm1312, %v1296, 0
    %v1317 = vsel %vm1312, %v1297, 0
    %v1320 = vsel %vm1312, %v1298, 0
    %v1323 = vsel %vm1312, %v1299, 0
    %v1326 = vsel %vm1312, %v1300, 0
    %v1329 = vsel %vm1312, %v1301, 0
    %v1332 = vsel %vm1312, %v1302, 0
    %v1335 = vsel %vm1312, %v1303, 0
    %v1338 = vsel %vm1312, %v1304, 0
    %v1341 = vsel %vm1312, %v1305, 0
    %v1344 = vsel %vm1312, %v1306, 0
    %v1347 = vsel %vm1312, %v1307, 0
    %v1350 = vsel %vm1312, %v1308, 0
    %v1353 = vsel %vm1312, %v1309, 0
    %v1356 = vsel %vm1312, %v1310, 0
    %v1359 = vsel %vm1312, %v1311, 0
    %1361 = vmatprep.subr.mxu0 0.0
    %1362 = vmatpush1.msra.mxu0 %v1279
    %1363 = vmatprep.subr.mxu0 0.0
    %1364 = vmatpush1.msra.mxu0 0.0
    %1365 = vmatprep.subr.mxu0 0.0
    %1366 = vmatpush1.msra.mxu0 0.0
    %1367 = vmatprep.subr.mxu0 0.0
    %1368 = vmatpush1.msra.mxu0 0.0
    %1369 = vmatprep.subr.mxu0 0.0
    %1370 = vmatpush1.msra.mxu0 0.0
    %1371 = vmatprep.subr.mxu0 0.0
    %1372 = vmatpush1.msra.mxu0 0.0
    %1373 = vmatprep.subr.mxu0 0.0
    %1374 = vmatpush1.msra.mxu0 0.0
    %1375 = vmatprep.subr.mxu0 0.0
    %1376 = vmatpush1.msra.mxu0 0.0
    %1377 = vmatprep.subr.mxu0 0.0
    %1378 = vmatpush1.msra.mxu0 0.0
    %1379 = vmatprep.subr.mxu0 0.0
    %1380 = vmatpush1.msra.mxu0 0.0
    %1381 = vmatprep.subr.mxu0 0.0
    %1382 = vmatpush1.msra.mxu0 0.0
    %1383 = vmatprep.subr.mxu0 0.0
    %1384 = vmatpush1.msra.mxu0 0.0
    %1385 = vmatprep.subr.mxu0 0.0
    %1386 = vmatpush1.msra.mxu0 0.0
    %1387 = vmatprep.subr.mxu0 0.0
    %1388 = vmatpush1.msra.mxu0 0.0
    %1389 = vmatprep.subr.mxu0 0.0
    %1390 = vmatpush1.msra.mxu0 0.0
    %1391 = vmatprep.subr.mxu0 0.0
    %1392 = vmatpush1.msra.mxu0 0.0
    %1393 = vmatprep.subr.mxu0 0.0
    %1394 = vmatpush1.msra.mxu0 0.0
    %1395 = vmatprep.subr.mxu0 0.0
    %1396 = vmatpush1.msra.mxu0 0.0
    %1397 = vmatprep.subr.mxu0 0.0
    %1398 = vmatpush1.msra.mxu0 0.0
    %1399 = vmatprep.subr.mxu0 0.0
    %1400 = vmatpush1.msra.mxu0 0.0
    %1401 = vmatprep.subr.mxu0 0.0
    %1402 = vmatpush1.msra.mxu0 0.0
    %1403 = vmatprep.subr.mxu0 0.0
    %1404 = vmatpush1.msra.mxu0 0.0
    %1405 = vmatprep.subr.mxu0 0.0
    %1406 = vmatpush1.msra.mxu0 0.0
    %1407 = vmatprep.subr.mxu0 0.0
    %1408 = vmatpush1.msra.mxu0 0.0
    %1409 = vmatprep.subr.mxu0 0.0
    %1410 = vmatpush1.msra.mxu0 0.0
    %1411 = vmatprep.subr.mxu0 0.0
    %1412 = vmatpush1.msra.mxu0 0.0
    %1413 = vmatprep.subr.mxu0 0.0
    %1414 = vmatpush1.msra.mxu0 0.0
    %1415 = vmatprep.subr.mxu0 0.0
    %1416 = vmatpush1.msra.mxu0 0.0
    %1417 = vmatprep.subr.mxu0 0.0
    %1418 = vmatpush1.msra.mxu0 0.0
    %1419 = vmatprep.subr.mxu0 0.0
    %1420 = vmatpush1.msra.mxu0 0.0
    %1421 = vmatprep.subr.mxu0 0.0
    %1422 = vmatpush1.msra.mxu0 0.0
    %1423 = vmatprep.subr.mxu0 0.0
    %1424 = vmatpush1.msra.mxu0 0.0
    %1425 = vmatprep.mubr.f32.mxu0 0.0
    %1426 = vmatmul.mubr.f32.gmra.mrb[0].mxu0 %v1314
    %v1427 = vpop.f32.mrb[0].mxu0
    %v1428 = vadd.f32 0.0, %v1427
    %v1429 = vpop.f32.mrb[0].mxu0
    %1430 = vmatprep.mubr.f32.mxu0 0.0
    %1431 = vmatmul.mubr.f32.gmra.mrb[0].mxu0 %v1317
    %v1432 = vpop.f32.mrb[0].mxu0
    %v1433 = vadd.f32 0.0, %v1432
    %v1434 = vpop.f32.mrb[0].mxu0
    %1435 = vmatprep.mubr.f32.mxu0 0.0
    %1436 = vmatmul.mubr.f32.gmra.mrb[0].mxu0 %v1320
    %v1437 = vpop.f32.mrb[0].mxu0
    %v1438 = vadd.f32 0.0, %v1437
    %v1439 = vpop.f32.mrb[0].mxu0
    %1440 = vmatprep.mubr.f32.mxu0 0.0
    %1441 = vmatmul.mubr.f32.gmra.mrb[0].mxu0 %v1323
    %v1442 = vpop.f32.mrb[0].mxu0
    %v1443 = vadd.f32 0.0, %v1442
    %v1444 = vpop.f32.mrb[0].mxu0
    %1445 = vmatprep.mubr.f32.mxu0 0.0
    %1446 = vmatmul.mubr.f32.gmra.mrb[0].mxu0 %v1326
    %v1447 = vpop.f32.mrb[0].mxu0
    %v1448 = vadd.f32 0.0, %v1447
    %v1449 = vpop.f32.mrb[0].mxu0
    %1450 = vmatprep.mubr.f32.mxu0 0.0
    %1451 = vmatmul.mubr.f32.gmra.mrb[0].mxu0 %v1329
    %v1452 = vpop.f32.mrb[0].mxu0
    %v1453 = vadd.f32 0.0, %v1452
    %v1454 = vpop.f32.mrb[0].mxu0
    %1455 = vmatprep.mubr.f32.mxu0 0.0
    %1456 = vmatmul.mubr.f32.gmra.mrb[0].mxu0 %v1332
    %v1457 = vpop.f32.mrb[0].mxu0
    %v1458 = vadd.f32 0.0, %v1457
    %v1459 = vpop.f32.mrb[0].mxu0
    %1460 = vmatprep.mubr.f32.mxu0 0.0
    %1461 = vmatmul.mubr.f32.gmra.mrb[0].mxu0 %v1335
    %v1462 = vpop.f32.mrb[0].mxu0
    %v1463 = vadd.f32 0.0, %v1462
    %v1464 = vpop.f32.mrb[0].mxu0
    %1465 = vmatprep.mubr.f32.mxu0 0.0
    %1466 = vmatmul.mubr.f32.gmra.mrb[0].mxu0 %v1338
    %v1467 = vpop.f32.mrb[0].mxu0
    %v1468 = vadd.f32 0.0, %v1467
    %v1469 = vpop.f32.mrb[0].mxu0
    %1470 = vmatprep.mubr.f32.mxu0 0.0
    %1471 = vmatmul.mubr.f32.gmra.mrb[0].mxu0 %v1341
    %v1472 = vpop.f32.mrb[0].mxu0
    %v1473 = vadd.f32 0.0, %v1472
    %v1474 = vpop.f32.mrb[0].mxu0
    %1475 = vmatprep.mubr.f32.mxu0 0.0
    %1476 = vmatmul.mubr.f32.gmra.mrb[0].mxu0 %v1344
    %v1477 = vpop.f32.mrb[0].mxu0
    %v1478 = vadd.f32 0.0, %v1477
    %v1479 = vpop.f32.mrb[0].mxu0
    %1480 = vmatprep.mubr.f32.mxu0 0.0
    %1481 = vmatmul.mubr.f32.gmra.mrb[0].mxu0 %v1347
    %v1482 = vpop.f32.mrb[0].mxu0
    %v1483 = vadd.f32 0.0, %v1482
    %v1484 = vpop.f32.mrb[0].mxu0
    %1485 = vmatprep.mubr.f32.mxu0 0.0
    %1486 = vmatmul.mubr.f32.gmra.mrb[0].mxu0 %v1350
    %v1487 = vpop.f32.mrb[0].mxu0
    %v1488 = vadd.f32 0.0, %v1487
    %v1489 = vpop.f32.mrb[0].mxu0
    %1490 = vmatprep.mubr.f32.mxu0 0.0
    %1491 = vmatmul.mubr.f32.gmra.mrb[0].mxu0 %v1353
    %v1492 = vpop.f32.mrb[0].mxu0
    %v1493 = vadd.f32 0.0, %v1492
    %v1494 = vpop.f32.mrb[0].mxu0
    %1495 = vmatprep.mubr.f32.mxu0 0.0
    %1496 = vmatmul.mubr.f32.gmra.mrb[0].mxu0 %v1356
    %v1497 = vpop.f32.mrb[0].mxu0
    %v1498 = vadd.f32 0.0, %v1497
    %v1499 = vpop.f32.mrb[0].mxu0
    %1500 = vmatprep.mubr.f32.mxu0 0.0
    %1501 = vmatmul.mubr.f32.gmra.mrb[0].mxu0 %v1359
    %v1502 = vpop.f32.mrb[0].mxu0
    %v1503 = vadd.f32 0.0, %v1502
    %v1504 = vpop.f32.mrb[0].mxu0
    %1505 = vdwg.mxu0
    %v1506 = vmul.f32 %v1428, 0.125
    %v1507 = vmul.f32 %v1433, 0.125
    %v1508 = vmul.f32 %v1438, 0.125
    %v1509 = vmul.f32 %v1443, 0.125
    %v1510 = vmul.f32 %v1448, 0.125
    %v1511 = vmul.f32 %v1453, 0.125
    %v1512 = vmul.f32 %v1458, 0.125
    %v1513 = vmul.f32 %v1463, 0.125
    %v1514 = vmul.f32 %v1468, 0.125
    %v1515 = vmul.f32 %v1473, 0.125
    %v1516 = vmul.f32 %v1478, 0.125
    %v1517 = vmul.f32 %v1483, 0.125
    %v1518 = vmul.f32 %v1488, 0.125
    %v1519 = vmul.f32 %v1493, 0.125
    %v1520 = vmul.f32 %v1498, 0.125
    %v1521 = vmul.f32 %v1503, 0.125
    %v1522 = vlaneseq
    %v1523 = vshrl.u32 %v1522, 7
    %v1524 = vadd.s32 %v1523, 8
    %v1525 = vadd.s32 %v1523, 16
    %v1526 = vadd.s32 %v1523, 24
    %v1527 = vadd.s32 %v1523, 32
    %v1528 = vadd.s32 %v1523, 40
    %v1529 = vadd.s32 %v1523, 48
    %v1530 = vadd.s32 %v1523, 56
    %v1531 = vadd.s32 %v1523, 64
    %v1532 = vadd.s32 %v1523, 72
    %v1533 = vadd.s32 %v1523, 80
    %v1534 = vadd.s32 %v1523, 88
    %v1535 = vadd.s32 %v1523, 96
    %v1536 = vadd.s32 %v1523, 104
    %v1537 = vadd.s32 %v1523, 112
    %v1538 = vadd.s32 %v1523, 120
    %v1539 = vlaneseq
    %v1540 = vand.u32 %v1539, 127
    %vm1541 = vcmp.eq.s32.totalorder %v1523, %v1540
    %vm1542 = vcmp.eq.s32.totalorder %v1524, %v1540
    %vm1543 = vcmp.eq.s32.totalorder %v1525, %v1540
    %vm1544 = vcmp.eq.s32.totalorder %v1526, %v1540
    %vm1545 = vcmp.eq.s32.totalorder %v1527, %v1540
    %vm1546 = vcmp.eq.s32.totalorder %v1528, %v1540
    %vm1547 = vcmp.eq.s32.totalorder %v1529, %v1540
    %vm1548 = vcmp.eq.s32.totalorder %v1530, %v1540
    %vm1549 = vcmp.eq.s32.totalorder %v1531, %v1540
    %vm1550 = vcmp.eq.s32.totalorder %v1532, %v1540
    %vm1551 = vcmp.eq.s32.totalorder %v1533, %v1540
    %vm1552 = vcmp.eq.s32.totalorder %v1534, %v1540
    %vm1553 = vcmp.eq.s32.totalorder %v1535, %v1540
    %vm1554 = vcmp.eq.s32.totalorder %v1536, %v1540
    %vm1555 = vcmp.eq.s32.totalorder %v1537, %v1540
    %vm1556 = vcmp.eq.s32.totalorder %v1538, %v1540
    %vm1557 = vcmp.lt.s32.totalorder %v1523, 32
    %vm1558 = vcmp.lt.s32.totalorder %v1524, 32
    %vm1559 = vcmp.lt.s32.totalorder %v1525, 32
    %vm1560 = vcmp.lt.s32.totalorder %v1526, 32
    %vm1561 = vcmp.lt.s32.totalorder %v1527, 32
    %vm1562 = vcmp.lt.s32.totalorder %v1528, 32
    %vm1563 = vcmp.lt.s32.totalorder %v1529, 32
    %vm1564 = vcmp.lt.s32.totalorder %v1530, 32
    %vm1565 = vcmp.lt.s32.totalorder %v1531, 32
    %vm1566 = vcmp.lt.s32.totalorder %v1532, 32
    %vm1567 = vcmp.lt.s32.totalorder %v1533, 32
    %vm1568 = vcmp.lt.s32.totalorder %v1534, 32
    %vm1569 = vcmp.lt.s32.totalorder %v1535, 32
    %vm1570 = vcmp.lt.s32.totalorder %v1536, 32
    %vm1571 = vcmp.lt.s32.totalorder %v1537, 32
    %vm1572 = vcmp.lt.s32.totalorder %v1538, 32
    %vm1573 = vmand %vm1541, %vm1557
    %vm1574 = vmand %vm1542, %vm1558
    %vm1575 = vmand %vm1543, %vm1559
    %vm1576 = vmand %vm1544, %vm1560
    %vm1577 = vmand %vm1545, %vm1561
    %vm1578 = vmand %vm1546, %vm1562
    %vm1579 = vmand %vm1547, %vm1563
    %vm1580 = vmand %vm1548, %vm1564
    %vm1581 = vmand %vm1549, %vm1565
    %vm1582 = vmand %vm1550, %vm1566
    %vm1583 = vmand %vm1551, %vm1567
    %vm1584 = vmand %vm1552, %vm1568
    %vm1585 = vmand %vm1553, %vm1569
    %vm1586 = vmand %vm1554, %vm1570
    %vm1587 = vmand %vm1555, %vm1571
    %vm1588 = vmand %vm1556, %vm1572
    %v1589 = vmul.f32 %v1506, %v1506
    %v1590 = vmul.f32 %v1507, %v1507
    %v1591 = vmul.f32 %v1508, %v1508
    %v1592 = vmul.f32 %v1509, %v1509
    %v1593 = vmul.f32 %v1510, %v1510
    %v1594 = vmul.f32 %v1511, %v1511
    %v1595 = vmul.f32 %v1512, %v1512
    %v1596 = vmul.f32 %v1513, %v1513
    %v1597 = vmul.f32 %v1514, %v1514
    %v1598 = vmul.f32 %v1515, %v1515
    %v1599 = vmul.f32 %v1516, %v1516
    %v1600 = vmul.f32 %v1517, %v1517
    %v1601 = vmul.f32 %v1518, %v1518
    %v1602 = vmul.f32 %v1519, %v1519
    %v1603 = vmul.f32 %v1520, %v1520
    %v1604 = vmul.f32 %v1521, %v1521
    %v1605 = vadd.f32 %v1589, %v1590
    %v1606 = vadd.f32 %v1605, %v1591
    %v1607 = vadd.f32 %v1606, %v1592
    %v1608 = vadd.f32 %v1607, %v1593
    %v1609 = vadd.f32 %v1608, %v1594
    %v1610 = vadd.f32 %v1609, %v1595
    %v1611 = vadd.f32 %v1610, %v1596
    %v1612 = vadd.f32 %v1611, %v1597
    %v1613 = vadd.f32 %v1612, %v1598
    %v1614 = vadd.f32 %v1613, %v1599
    %v1615 = vadd.f32 %v1614, %v1600
    %v1616 = vadd.f32 %v1615, %v1601
    %v1617 = vadd.f32 %v1616, %v1602
    %v1618 = vadd.f32 %v1617, %v1603
    %v1619 = vadd.f32 %v1618, %v1604
    %1620 = vadd.xlane.f32.xlu0 %v1619
    %v1621 = vpop.xlane.xlu0 %1620
    %v1622 = vrot.slane %v1621, 4
    %v1623 = vadd.f32 %v1621, %v1622
    %v1624 = vrot.slane %v1623, 2
    %v1625 = vadd.f32 %v1623, %v1624
    %v1626 = vrot.slane %v1625, 1
    %v1627 = vadd.f32 %v1625, %v1626
    %s1628 = vtos %v1627
    %v1629 = vsub.f32 %v1506, 1.0
    %v1630 = vsub.f32 %v1507, 1.0
    %v1631 = vsub.f32 %v1508, 1.0
    %v1632 = vsub.f32 %v1509, 1.0
    %v1633 = vsub.f32 %v1510, 1.0
    %v1634 = vsub.f32 %v1511, 1.0
    %v1635 = vsub.f32 %v1512, 1.0
    %v1636 = vsub.f32 %v1513, 1.0
    %v1637 = vsub.f32 %v1514, 1.0
    %v1638 = vsub.f32 %v1515, 1.0
    %v1639 = vsub.f32 %v1516, 1.0
    %v1640 = vsub.f32 %v1517, 1.0
    %v1641 = vsub.f32 %v1518, 1.0
    %v1642 = vsub.f32 %v1519, 1.0
    %v1643 = vsub.f32 %v1520, 1.0
    %v1644 = vsub.f32 %v1521, 1.0
    %v1645 = vmul.f32 %v1629, %v1629
    %v1646 = vmul.f32 %v1630, %v1630
    %v1647 = vmul.f32 %v1631, %v1631
    %v1648 = vmul.f32 %v1632, %v1632
    %v1649 = vmul.f32 %v1633, %v1633
    %v1650 = vmul.f32 %v1634, %v1634
    %v1651 = vmul.f32 %v1635, %v1635
    %v1652 = vmul.f32 %v1636, %v1636
    %v1653 = vmul.f32 %v1637, %v1637
    %v1654 = vmul.f32 %v1638, %v1638
    %v1655 = vmul.f32 %v1639, %v1639
    %v1656 = vmul.f32 %v1640, %v1640
    %v1657 = vmul.f32 %v1641, %v1641
    %v1658 = vmul.f32 %v1642, %v1642
    %v1659 = vmul.f32 %v1643, %v1643
    %v1660 = vmul.f32 %v1644, %v1644
    %v1661 = vmul.f32 %v1506, 0.0051
    %v1662 = vmul.f32 %v1507, 0.0051
    %v1663 = vmul.f32 %v1508, 0.0051
    %v1664 = vmul.f32 %v1509, 0.0051
    %v1665 = vmul.f32 %v1510, 0.0051
    %v1666 = vmul.f32 %v1511, 0.0051
    %v1667 = vmul.f32 %v1512, 0.0051
    %v1668 = vmul.f32 %v1513, 0.0051
    %v1669 = vmul.f32 %v1514, 0.0051
    %v1670 = vmul.f32 %v1515, 0.0051
    %v1671 = vmul.f32 %v1516, 0.0051
    %v1672 = vmul.f32 %v1517, 0.0051
    %v1673 = vmul.f32 %v1518, 0.0051
    %v1674 = vmul.f32 %v1519, 0.0051
    %v1675 = vmul.f32 %v1520, 0.0051
    %v1676 = vmul.f32 %v1521, 0.0051
    %v1677 = vmul.f32 %v1661, %v1506
    %v1678 = vmul.f32 %v1662, %v1507
    %v1679 = vmul.f32 %v1663, %v1508
    %v1680 = vmul.f32 %v1664, %v1509
    %v1681 = vmul.f32 %v1665, %v1510
    %v1682 = vmul.f32 %v1666, %v1511
    %v1683 = vmul.f32 %v1667, %v1512
    %v1684 = vmul.f32 %v1668, %v1513
    %v1685 = vmul.f32 %v1669, %v1514
    %v1686 = vmul.f32 %v1670, %v1515
    %v1687 = vmul.f32 %v1671, %v1516
    %v1688 = vmul.f32 %v1672, %v1517
    %v1689 = vmul.f32 %v1673, %v1518
    %v1690 = vmul.f32 %v1674, %v1519
    %v1691 = vmul.f32 %v1675, %v1520
    %v1692 = vmul.f32 %v1676, %v1521
    %v1693 = vsub.f32 %v1645, %v1677
    %v1694 = vsub.f32 %v1646, %v1678
    %v1695 = vsub.f32 %v1647, %v1679
    %v1696 = vsub.f32 %v1648, %v1680
    %v1697 = vsub.f32 %v1649, %v1681
    %v1698 = vsub.f32 %v1650, %v1682
    %v1699 = vsub.f32 %v1651, %v1683
    %v1700 = vsub.f32 %v1652, %v1684
    %v1701 = vsub.f32 %v1653, %v1685
    %v1702 = vsub.f32 %v1654, %v1686
    %v1703 = vsub.f32 %v1655, %v1687
    %v1704 = vsub.f32 %v1656, %v1688
    %v1705 = vsub.f32 %v1657, %v1689
    %v1706 = vsub.f32 %v1658, %v1690
    %v1707 = vsub.f32 %v1659, %v1691
    %v1708 = vsub.f32 %v1660, %v1692
    %v1709 = vsel %vm1573, %v1693, 0.0
    %v1710 = vsel %vm1574, %v1694, 0.0
    %v1711 = vsel %vm1575, %v1695, 0.0
    %v1712 = vsel %vm1576, %v1696, 0.0
    %v1713 = vsel %vm1577, %v1697, 0.0
    %v1714 = vsel %vm1578, %v1698, 0.0
    %v1715 = vsel %vm1579, %v1699, 0.0
    %v1716 = vsel %vm1580, %v1700, 0.0
    %v1717 = vsel %vm1581, %v1701, 0.0
    %v1718 = vsel %vm1582, %v1702, 0.0
    %v1719 = vsel %vm1583, %v1703, 0.0
    %v1720 = vsel %vm1584, %v1704, 0.0
    %v1721 = vsel %vm1585, %v1705, 0.0
    %v1722 = vsel %vm1586, %v1706, 0.0
    %v1723 = vsel %vm1587, %v1707, 0.0
    %v1724 = vsel %vm1588, %v1708, 0.0
    %v1725 = vadd.f32 %v1709, %v1710
    %v1726 = vadd.f32 %v1725, %v1711
    %v1727 = vadd.f32 %v1726, %v1712
    %v1728 = vadd.f32 %v1727, %v1713
    %v1729 = vadd.f32 %v1728, %v1714
    %v1730 = vadd.f32 %v1729, %v1715
    %v1731 = vadd.f32 %v1730, %v1716
    %v1732 = vadd.f32 %v1731, %v1717
    %v1733 = vadd.f32 %v1732, %v1718
    %v1734 = vadd.f32 %v1733, %v1719
    %v1735 = vadd.f32 %v1734, %v1720
    %v1736 = vadd.f32 %v1735, %v1721
    %v1737 = vadd.f32 %v1736, %v1722
    %v1738 = vadd.f32 %v1737, %v1723
    %v1739 = vadd.f32 %v1738, %v1724
    %1740 = vadd.xlane.f32.xlu0 %v1739
    %v1741 = vpop.xlane.xlu0 %1740
    %v1742 = vrot.slane %v1741, 4
    %v1743 = vadd.f32 %v1741, %v1742
    %v1744 = vrot.slane %v1743, 2
    %v1745 = vadd.f32 %v1743, %v1744
    %v1746 = vrot.slane %v1745, 1
    %v1747 = vadd.f32 %v1745, %v1746
    %s1748 = vtos %v1747
    %s1749 = smul.f32 %s1628, 0.0051
    %s1750 = sadd.f32 %s1749, %s1748
    %s1751 = scalar_lea.smem [#allocation13], 0
    %1752 = sst [smem:[%s1751]] %s1750
    // Predicated region
    $region54: #{tpu_custom_call.1} parent=1 // pred_check
      _
    $region55: #{tpu_custom_call.1} parent=1 // pred_check_branch
      %1754 = sbr.rel (0) target = $region57
    $region56: #{tpu_custom_call.1} parent=1 // pred_region
      %s1756 = ssub.s32 16, 16
      %1757 = vsyncadd [#allocation4], %s1756
      %1760 = dma.smem_to_hbm [#allocation13], 16, %s7, [#allocation4]
    $region57: #{tpu_custom_call.1} parent=1 // pred_fallthru
      _
    // Predicated region
    $region58: #{tpu_custom_call.1} parent=1 // pred_check
      _
    $region59: #{tpu_custom_call.1} parent=1 // pred_check_branch
      %1762 = sbr.rel (0) target = $region61
    $region60: #{tpu_custom_call.1} parent=1 // pred_region
      %1763 = dma.done [#allocation4], 16
    $region61: #{tpu_custom_call.1} parent=1 // pred_fallthru
      _
    %1764 = sfence
    %1765 = vsyncpa [#allocation3], 1
    %1766 = vsyncpa [#allocation6], 1
    %1767 = vsyncpa [#allocation9], 1
    %1768 = vsyncpa [#allocation12], 1
    %1769 = vsyncpa [#allocation4], 1

</llo_original>
